<compile_context>
chip_gen: v7x
topology: tpu7x:2x2x1
jax: 0.10.0
libtpu: 0.0.40
codegen_flags: <defaults>
</compile_context>

<pallas_src>
import enum

import jax
import jax.numpy as jnp
from jax import lax
from jax.experimental import pallas as pl
from jax.experimental.pallas import tpu as pltpu


class CodecStageEnum(enum.Enum):
    TRAIN = 1
    TEST = 2


# ---------------------------------------------------------------------------
# Kernel
# ---------------------------------------------------------------------------
def _conv_im2row_kernel(x_ref, w_ref, b_ref, o_ref, im2row_ref):
    """One (batch, row-tile) grid step of the KxK 'same' convolution.

    x_ref:      (1, H, W*Cin)      un-padded lane-dense input image (bf16)
    w_ref:      (K*W*Cin, W*Cout)  banded Toeplitz RHS: ky/kx/Cin contraction and
                                   the W zero padding folded in (bf16)
    b_ref:      (1, W*Cout)        bias replicated across W (f32)
    o_ref:      (1, TH, W*Cout)    lane-dense output row tile (x.dtype)
    im2row_ref: (H, K*W*Cin)       per-batch im2row scratch (f32), built at r == 0
    """
    H, WC = x_ref.shape[1], x_ref.shape[2]
    KWC = im2row_ref.shape[1]
    K = KWC // WC
    pad = (K - 1) // 2
    TH = o_ref.shape[1]

    r = pl.program_id(1)

    # Build the im2row buffer once per image (first row tile of each batch).
    # The H halo is zeroed here with all-static slices -- no wrapper jnp.pad.
    @pl.when(r == 0)
    def _():
        im2row_ref[...] = jnp.zeros_like(im2row_ref)
        for ky in range(K):                        # static unroll
            lo = max(0, pad - ky)                  # first output row with a valid source
            hi = H - max(0, ky - pad)              # one past the last valid output row
            im2row_ref[lo:hi, ky * WC:(ky + 1) * WC] = (
                x_ref[0, lo + ky - pad:hi + ky - pad, :].astype(im2row_ref.dtype))

    # One lane-dense, K*W*Cin-deep MXU matmul per row tile (f32 accumulate);
    # bias added in f32; result stored directly in the final output dtype.
    row0 = pl.multiple_of(r * TH, TH)
    lhs = im2row_ref[pl.ds(row0, TH), :].astype(w_ref.dtype)
    acc = jnp.dot(lhs, w_ref[...], preferred_element_type=jnp.float32)
    o_ref[0] = (acc + b_ref[...]).astype(o_ref.dtype)


# ---------------------------------------------------------------------------
# Grid-invariant operand preparation (run once per weight, NOT per forward)
# ---------------------------------------------------------------------------
def _toeplitz_weights(weight_oihw, W):
    """Expand (Cout, Cin, K, K) conv weights into a (K, W*Cin, W*Cout) band.

    toe[ky, xi*Cin + ci, xo*Cout + co] = w[co, ci, ky, xi - xo + pad]
    (zero outside the band), so the kx/Cin contraction and the zero padding
    along W are absorbed into a lane-dense matmul RHS.
    """
    Cout, Cin, K, _ = weight_oihw.shape
    pad = (K - 1) // 2
    w_hwio = jnp.transpose(weight_oihw, (2, 3, 1, 0))       # (K, K, Cin, Cout)

    xs = jnp.arange(W)
    kx = xs[:, None] - xs[None, :] + pad                    # (W_in, W_out)
    valid = (kx >= 0) & (kx < K)
    kx_c = jnp.clip(kx, 0, K - 1)

    g = w_hwio[:, kx_c]                                     # (K, W_in, W_out, Cin, Cout)
    g = jnp.where(valid[None, :, :, None, None], g, 0.0)
    toe = jnp.transpose(g, (0, 1, 3, 2, 4))                 # (K, W_in, Cin, W_out, Cout)
    return toe.reshape(K, W * Cin, W * Cout)


def prepare_adaptive_context_params(weight_oihw, bias, W):
    """Build the grid-invariant kernel operands once per (weight, W).

    Returns:
      toe : (K*W*Cin, W*Cout) bf16 banded Toeplitz RHS (ky, kx, Cin contraction
            and the W zero padding all folded in).
      b_wc: (1, W*Cout) f32 bias replicated across W.
    """
    Cout, Cin, K, _ = weight_oihw.shape
    # TODO(synk): for production W (>= ~64), W-block this into
    # (K, (TW+2*pad)*Cin, TW*Cout) bands + a W-tile grid axis to bound the
    # O(W^2) VMEM / MXU-FLOP inflation (hits v7x's 64 MiB VMEM first).
    toe = _toeplitz_weights(weight_oihw, W).reshape(K * W * Cin, W * Cout)
    toe = toe.astype(jnp.bfloat16)
    b_wc = jnp.tile(bias.astype(jnp.float32), (W,)).reshape(1, W * Cout)
    return toe, b_wc


# ---------------------------------------------------------------------------
# pallas_call wrapper
# ---------------------------------------------------------------------------
def _pick_row_tile(H, B):
    # Largest row tile (multiple of 16 preferred, then 8) dividing H that still
    # leaves at least 2 total grid steps (B * H/TH >= 2) so the pipeline has
    # more than one step and both v7x TensorCores get work.
    for cand in (256, 128, 64, 32, 16, 8):
        if H % cand == 0 and B * (H // cand) >= 2:
            return cand
    return H


def _conv_folded_call(x_fold, toe, b_wc, out_dtype, single_buffer):
    B, H, WC = x_fold.shape
    KWC, WCout = toe.shape
    TH = _pick_row_tile(H, B)
    inv = dict(pipeline_mode=pl.Buffered(1)) if single_buffer else {}

    return pl.pallas_call(
        _conv_im2row_kernel,
        out_shape=jax.ShapeDtypeStruct((B, H, WCout), out_dtype),
        grid=(B, H // TH),
        in_specs=[
            pl.BlockSpec((1, H, WC), lambda b, r: (b, 0, 0)),
            pl.BlockSpec((KWC, WCout), lambda b, r: (0, 0), **inv),
            pl.BlockSpec((1, WCout), lambda b, r: (0, 0), **inv),
        ],
        out_specs=pl.BlockSpec((1, TH, WCout), lambda b, r: (b, r, 0)),
        scratch_shapes=[pltpu.VMEM((H, KWC), jnp.float32)],
        compiler_params=pltpu.CompilerParams(
            # b is independent (megacore / 2-TC sharding); r carries the per-batch
            # im2row scratch, so it must stay sequential.
            dimension_semantics=("parallel", "arbitrary"),
            vmem_limit_bytes=32 * 1024 * 1024,
        ),
    )(x_fold, toe, b_wc)


_SINGLE_BUFFER_SUPPORTED = None  # resolved lazily on the first call


def adaptive_context_conv_folded(x_fold, toe, b_wc, *, out_dtype=None):
    """Lane-dense entry point: x_fold is (B, H, W*Cin), output is (B, H, W*Cout).

    Callers that already keep activations in this layout avoid the NCHW
    transpose glue entirely.
    """
    global _SINGLE_BUFFER_SUPPORTED
    out_dtype = x_fold.dtype if out_dtype is None else out_dtype
    if _SINGLE_BUFFER_SUPPORTED is not False:
        try:
            out = _conv_folded_call(x_fold, toe, b_wc, out_dtype, single_buffer=True)
            _SINGLE_BUFFER_SUPPORTED = True
            return out
        except Exception:  # pipeline_mode=pl.Buffered(1) unsupported on this build
            _SINGLE_BUFFER_SUPPORTED = False
    # Fallback: default double buffering (2x VMEM for the grid-invariant RHS,
    # correctness unchanged).
    return _conv_folded_call(x_fold, toe, b_wc, out_dtype, single_buffer=False)


def adaptive_context_forward(x_nchw, toe, b_wc, stage):
    """NCHW-in / NCHW-out forward matching the PyTorch module semantics."""
    B, Cin, H, W = x_nchw.shape
    WCout = b_wc.shape[-1]
    Cout = WCout // W

    # Layout glue: NCHW -> lane-dense (B, H, W*Cin); bf16 cast rides the relayout
    # copy.  The W halo lives in the Toeplitz weights and the H halo is handled
    # inside the kernel, so there is no jnp.pad pass anymore.
    # TODO(synk): accept/emit the lane-dense layout from the surrounding model
    # (adaptive_context_conv_folded) or relayout via pl.ANY + manual DMA to
    # remove these two remaining full-HBM transpose passes.
    x_fold = jnp.transpose(x_nchw, (0, 2, 3, 1)).reshape(B, H, W * Cin)
    x_fold = x_fold.astype(jnp.bfloat16)

    out_fold = adaptive_context_conv_folded(x_fold, toe, b_wc, out_dtype=x_nchw.dtype)
    out = jnp.transpose(out_fold.reshape(B, H, W, Cout), (0, 3, 1, 2))

    if stage == CodecStageEnum.TRAIN:
        # anchor = torch.zeros(B, 2*Cin, H, W) -- trivial constant, plain XLA glue.
        anchor = jnp.zeros((B, 2 * Cin, H, W), x_nchw.dtype)
        return out, anchor
    return out


class AdaptiveContext:
    """JAX/Pallas port of AdaptiveContext: conv params prepared once per weight."""

    def __init__(self, weight_oihw, bias):
        self.weight = weight_oihw
        self.bias = bias
        self._params = {}  # W -> (toe, b_wc), built once per spatial width

    def _get_params(self, W):
        if W not in self._params:
            self._params[W] = prepare_adaptive_context_params(self.weight, self.bias, W)
        return self._params[W]

    def __call__(self, x_nchw, stage):
        toe, b_wc = self._get_params(x_nchw.shape[-1])
        return adaptive_context_forward(x_nchw, toe, b_wc, stage)


# ---------------------------------------------------------------------------
# Reference + self-test
# ---------------------------------------------------------------------------
def _reference_conv(x_nchw, weight_oihw, bias):
    """Pure-JAX reference (same semantics as nn.Conv2d(k, 1, (k-1)//2))."""
    out = lax.conv_general_dilated(
        x_nchw, weight_oihw,
        window_strides=(1, 1),
        padding="SAME",
        dimension_numbers=("NCHW", "OIHW", "NCHW"),
        precision=lax.Precision.HIGHEST,
    )
    return out + bias.reshape(1, -1, 1, 1)


if __name__ == "__main__":
    # Small shapes consistent with the module: B=2, Cin=4, Cout=8, H=W=16, k=5.
    B, Cin, Cout, H, W, K = 2, 4, 8, 16, 16, 5

    key = jax.random.PRNGKey(0)
    k_x, k_w, k_b = jax.random.split(key, 3)

    x = jax.random.normal(k_x, (B, Cin, H, W), dtype=jnp.float32)
    fan_in = Cin * K * K
    bound = 1.0 / (fan_in ** 0.5)
    weight = jax.random.uniform(k_w, (Cout, Cin, K, K), jnp.float32, -bound, bound)
    bias = jax.random.uniform(k_b, (Cout,), jnp.float32, -bound, bound)

    module = AdaptiveContext(weight, bias)  # Toeplitz RHS built once, cached per W

    out, anchor = module(x, CodecStageEnum.TRAIN)
    out = jax.block_until_ready(out)
    anchor = jax.block_until_ready(anchor)

    out_test = jax.block_until_ready(module(x, CodecStageEnum.TEST))

    # Reference: f32 conv over the same bf16-rounded operands the kernel consumes
    # (bf16 MXU operands / f32 accumulation is intentional; see perf review note).
    x_b = x.astype(jnp.bfloat16).astype(jnp.float32)
    w_b = weight.astype(jnp.bfloat16).astype(jnp.float32)
    ref = _reference_conv(x_b, w_b, bias)

    assert out.shape == (B, Cout, H, W)
    assert anchor.shape == (B, 2 * Cin, H, W)
    assert jnp.allclose(out, ref, atol=2e-3, rtol=2e-3), "conv mismatch vs reference"
    assert jnp.allclose(out_test, out), "TRAIN vs TEST conv mismatch"
    assert float(jnp.abs(anchor).sum()) == 0.0

    print("KERNEL_OK")
</pallas_src>

<mosaic_0001>
module attributes {stable_mosaic.version = 11 : i64} {
  func.func @_conv_im2row_kernel(%arg0: i32, %arg1: i32, %arg2: memref<1x16x64xbf16, #tpu.memory_space<vmem>>, %arg3: memref<320x128xbf16, #tpu.memory_space<vmem>>, %arg4: memref<1x128xf32, #tpu.memory_space<vmem>>, %arg5: memref<1x16x128xf32, #tpu.memory_space<vmem>>, %arg6: memref<16x320xf32, #tpu.memory_space<vmem>>) attributes {dimension_semantics = [#tpu.dimension_semantics<parallel>, #tpu.dimension_semantics<arbitrary>], iteration_bounds = array<i64: 2, 1>, scalar_prefetch = 0 : i64, scratch_operands = 1 : i64, tpu.core_type = #tpu.core_type<tc>, window_params = [{transform_indices = @transform_0, window_bounds = array<i64: 1, 16, 64>}, {pipeline_mode = #tpu.pipeline_mode<synchronous>, transform_indices = @transform_1, window_bounds = array<i64: 320, 128>}, {pipeline_mode = #tpu.pipeline_mode<synchronous>, transform_indices = @transform_2, window_bounds = array<i64: 1, 128>}, {transform_indices = @transform_3, window_bounds = array<i64: 1, 16, 128>}]} {
    %c0_i32 = arith.constant 0 : i32
    %0 = arith.cmpi eq, %arg1, %c0_i32 : i32
    %1 = arith.extui %0 : i1 to i32
    %c0_i32_0 = arith.constant 0 : i32
    %2 = arith.cmpi ne, %1, %c0_i32_0 : i32
    scf.if %2 {
      %cst_8 = arith.constant 0.000000e+00 : f32
      %16 = vector.broadcast %cst_8 : f32 to vector<16x320xf32>
      %c0_9 = arith.constant 0 : index
      %c0_10 = arith.constant 0 : index
      %17 = vector.load %arg6[%c0_9, %c0_10] : memref<16x320xf32, #tpu.memory_space<vmem>>, vector<16x320xf32>
      tpu.vector_store %arg6[%c0_9, %c0_10], %16 {strides = array<i32>} : memref<16x320xf32, #tpu.memory_space<vmem>>, vector<16x320xf32>,
      %c0_11 = arith.constant 0 : index
      %c0_12 = arith.constant 0 : index
      %c0_13 = arith.constant 0 : index
      %18 = vector.load %arg2[%c0_11, %c0_12, %c0_13] : memref<1x16x64xbf16, #tpu.memory_space<vmem>>, vector<1x14x64xbf16>
      %19 = vector.shape_cast %18 : vector<1x14x64xbf16> to vector<14x64xbf16>
      %20 = arith.extf %19 : vector<14x64xbf16> to vector<14x64xf32>
      %c2 = arith.constant 2 : index
      %c0_14 = arith.constant 0 : index
      %21 = vector.load %arg6[%c2, %c0_14] : memref<16x320xf32, #tpu.memory_space<vmem>>, vector<14x64xf32>
      tpu.vector_store %arg6[%c2, %c0_14], %20 {strides = array<i32>} : memref<16x320xf32, #tpu.memory_space<vmem>>, vector<14x64xf32>,
      %c0_15 = arith.constant 0 : index
      %c0_16 = arith.constant 0 : index
      %c0_17 = arith.constant 0 : index
      %22 = vector.load %arg2[%c0_15, %c0_16, %c0_17] : memref<1x16x64xbf16, #tpu.memory_space<vmem>>, vector<1x15x64xbf16>
      %23 = vector.shape_cast %22 : vector<1x15x64xbf16> to vector<15x64xbf16>
      %24 = arith.extf %23 : vector<15x64xbf16> to vector<15x64xf32>
      %c1 = arith.constant 1 : index
      %c64 = arith.constant 64 : index
      %25 = vector.load %arg6[%c1, %c64] : memref<16x320xf32, #tpu.memory_space<vmem>>, vector<15x64xf32>
      tpu.vector_store %arg6[%c1, %c64], %24 {strides = array<i32>} : memref<16x320xf32, #tpu.memory_space<vmem>>, vector<15x64xf32>,
      %c0_18 = arith.constant 0 : index
      %c0_19 = arith.constant 0 : index
      %c0_20 = arith.constant 0 : index
      %26 = vector.load %arg2[%c0_18, %c0_19, %c0_20] : memref<1x16x64xbf16, #tpu.memory_space<vmem>>, vector<1x16x64xbf16>
      %27 = vector.shape_cast %26 : vector<1x16x64xbf16> to vector<16x64xbf16>
      %28 = arith.extf %27 : vector<16x64xbf16> to vector<16x64xf32>
      %c0_21 = arith.constant 0 : index
      %c128 = arith.constant 128 : index
      %29 = vector.load %arg6[%c0_21, %c128] : memref<16x320xf32, #tpu.memory_space<vmem>>, vector<16x64xf32>
      tpu.vector_store %arg6[%c0_21, %c128], %28 {strides = array<i32>} : memref<16x320xf32, #tpu.memory_space<vmem>>, vector<16x64xf32>,
      %c0_22 = arith.constant 0 : index
      %c1_23 = arith.constant 1 : index
      %c0_24 = arith.constant 0 : index
      %30 = vector.load %arg2[%c0_22, %c1_23, %c0_24] : memref<1x16x64xbf16, #tpu.memory_space<vmem>>, vector<1x15x64xbf16>
      %31 = vector.shape_cast %30 : vector<1x15x64xbf16> to vector<15x64xbf16>
      %32 = arith.extf %31 : vector<15x64xbf16> to vector<15x64xf32>
      %c0_25 = arith.constant 0 : index
      %c192 = arith.constant 192 : index
      %33 = vector.load %arg6[%c0_25, %c192] : memref<16x320xf32, #tpu.memory_space<vmem>>, vector<15x64xf32>
      tpu.vector_store %arg6[%c0_25, %c192], %32 {strides = array<i32>} : memref<16x320xf32, #tpu.memory_space<vmem>>, vector<15x64xf32>,
      %c0_26 = arith.constant 0 : index
      %c2_27 = arith.constant 2 : index
      %c0_28 = arith.constant 0 : index
      %34 = vector.load %arg2[%c0_26, %c2_27, %c0_28] : memref<1x16x64xbf16, #tpu.memory_space<vmem>>, vector<1x14x64xbf16>
      %35 = vector.shape_cast %34 : vector<1x14x64xbf16> to vector<14x64xbf16>
      %36 = arith.extf %35 : vector<14x64xbf16> to vector<14x64xf32>
      %c0_29 = arith.constant 0 : index
      %c256 = arith.constant 256 : index
      %37 = vector.load %arg6[%c0_29, %c256] : memref<16x320xf32, #tpu.memory_space<vmem>>, vector<14x64xf32>
      tpu.vector_store %arg6[%c0_29, %c256], %36 {strides = array<i32>} : memref<16x320xf32, #tpu.memory_space<vmem>>, vector<14x64xf32>,
    } else {
    }
    %c16_i32 = arith.constant 16 : i32
    %3 = arith.muli %arg1, %c16_i32 : i32
    %4 = tpu.assume_multiple %3, 16 : i32
    %5 = arith.index_cast %4 : i32 to index
    %c0 = arith.constant 0 : index
    %6 = vector.load %arg6[%5, %c0] : memref<16x320xf32, #tpu.memory_space<vmem>>, vector<16x320xf32>
    %7 = arith.truncf %6 : vector<16x320xf32> to vector<16x320xbf16>
    %c0_1 = arith.constant 0 : index
    %c0_2 = arith.constant 0 : index
    %8 = vector.load %arg3[%c0_1, %c0_2] : memref<320x128xbf16, #tpu.memory_space<vmem>>, vector<320x128xbf16>
    %cst = arith.constant dense<0.000000e+00> : vector<16x128xf32>
    %9 = tpu.matmul %7, %8, %cst {dimension_numbers = #tpu.dot_dimension_numbers<[1], [0], [0], [1], [0, 0, 1, 1], [], []>} : vector<16x320xbf16>, vector<320x128xbf16>, vector<16x128xf32> -> vector<16x128xf32>
    %c0_3 = arith.constant 0 : index
    %c0_4 = arith.constant 0 : index
    %10 = vector.load %arg4[%c0_3, %c0_4] : memref<1x128xf32, #tpu.memory_space<vmem>>, vector<1x128xf32>
    %11 = vector.broadcast %10 : vector<1x128xf32> to vector<16x128xf32>
    %12 = arith.addf %9, %11 : vector<16x128xf32>
    %c0_5 = arith.constant 0 : index
    %c0_6 = arith.constant 0 : index
    %c0_7 = arith.constant 0 : index
    %13 = vector.load %arg5[%c0_5, %c0_6, %c0_7] : memref<1x16x128xf32, #tpu.memory_space<vmem>>, vector<1x16x128xf32>
    %14 = vector.shape_cast %13 : vector<1x16x128xf32> to vector<16x128xf32>
    %15 = vector.shape_cast %12 : vector<16x128xf32> to vector<1x16x128xf32>
    tpu.vector_store %arg5[%c0_5, %c0_6, %c0_7], %15 {strides = array<i32>} : memref<1x16x128xf32, #tpu.memory_space<vmem>>, vector<1x16x128xf32>,
    return
  }
  func.func @transform_0(%arg0: i32, %arg1: i32) -> (i32, i32, i32) {
    %c0_i32 = arith.constant 0 : i32
    %c0_i32_0 = arith.constant 0 : i32
    %c0_i32_1 = arith.constant 0 : i32
    return %arg0, %c0_i32, %c0_i32_0 : i32, i32, i32
  }
  func.func @transform_1(%arg0: i32, %arg1: i32) -> (i32, i32) {
    %c0_i32 = arith.constant 0 : i32
    %c0_i32_0 = arith.constant 0 : i32
    %c0_i32_1 = arith.constant 0 : i32
    return %c0_i32, %c0_i32_0 : i32, i32
  }
  func.func @transform_2(%arg0: i32, %arg1: i32) -> (i32, i32) {
    %c0_i32 = arith.constant 0 : i32
    %c0_i32_0 = arith.constant 0 : i32
    %c0_i32_1 = arith.constant 0 : i32
    return %c0_i32, %c0_i32_0 : i32, i32
  }
  func.func @transform_3(%arg0: i32, %arg1: i32) -> (i32, i32, i32) {
    %c0_i32 = arith.constant 0 : i32
    %c0_i32_0 = arith.constant 0 : i32
    return %arg0, %arg1, %c0_i32 : i32, i32, i32
  }
}

module attributes {stable_mosaic.version = 11 : i64} {
  func.func @_conv_im2row_kernel(%arg0: i32, %arg1: i32, %arg2: memref<1x16x64xbf16, #tpu.memory_space<vmem>>, %arg3: memref<320x128xbf16, #tpu.memory_space<vmem>>, %arg4: memref<1x128xf32, #tpu.memory_space<vmem>>, %arg5: memref<1x16x128xf32, #tpu.memory_space<vmem>>, %arg6: memref<16x320xf32, #tpu.memory_space<vmem>>) attributes {dimension_semantics = [#tpu.dimension_semantics<parallel>, #tpu.dimension_semantics<arbitrary>], iteration_bounds = array<i64: 2, 1>, scalar_prefetch = 0 : i64, scratch_operands = 1 : i64, tpu.core_type = #tpu.core_type<tc>, window_params = [{transform_indices = @transform_0, window_bounds = array<i64: 1, 16, 64>}, {pipeline_mode = #tpu.pipeline_mode<synchronous>, transform_indices = @transform_1, window_bounds = array<i64: 320, 128>}, {pipeline_mode = #tpu.pipeline_mode<synchronous>, transform_indices = @transform_2, window_bounds = array<i64: 1, 128>}, {transform_indices = @transform_3, window_bounds = array<i64: 1, 16, 128>}]} {
    %c0_i32 = arith.constant 0 : i32
    %0 = arith.cmpi eq, %arg1, %c0_i32 : i32
    %1 = arith.extui %0 : i1 to i32
    %c0_i32_0 = arith.constant 0 : i32
    %2 = arith.cmpi ne, %1, %c0_i32_0 : i32
    scf.if %2 {
      %cst_8 = arith.constant 0.000000e+00 : f32
      %16 = vector.broadcast %cst_8 : f32 to vector<16x320xf32>
      %c0_9 = arith.constant 0 : index
      %c0_10 = arith.constant 0 : index
      %17 = vector.load %arg6[%c0_9, %c0_10] : memref<16x320xf32, #tpu.memory_space<vmem>>, vector<16x320xf32>
      tpu.vector_store %arg6[%c0_9, %c0_10], %16 {strides = array<i32>} : memref<16x320xf32, #tpu.memory_space<vmem>>, vector<16x320xf32>,
      %c0_11 = arith.constant 0 : index
      %c0_12 = arith.constant 0 : index
      %c0_13 = arith.constant 0 : index
      %18 = vector.load %arg2[%c0_11, %c0_12, %c0_13] : memref<1x16x64xbf16, #tpu.memory_space<vmem>>, vector<1x14x64xbf16>
      %19 = vector.shape_cast %18 : vector<1x14x64xbf16> to vector<14x64xbf16>
      %20 = arith.extf %19 : vector<14x64xbf16> to vector<14x64xf32>
      %c2 = arith.constant 2 : index
      %c0_14 = arith.constant 0 : index
      %21 = vector.load %arg6[%c2, %c0_14] : memref<16x320xf32, #tpu.memory_space<vmem>>, vector<14x64xf32>
      tpu.vector_store %arg6[%c2, %c0_14], %20 {strides = array<i32>} : memref<16x320xf32, #tpu.memory_space<vmem>>, vector<14x64xf32>,
      %c0_15 = arith.constant 0 : index
      %c0_16 = arith.constant 0 : index
      %c0_17 = arith.constant 0 : index
      %22 = vector.load %arg2[%c0_15, %c0_16, %c0_17] : memref<1x16x64xbf16, #tpu.memory_space<vmem>>, vector<1x15x64xbf16>
      %23 = vector.shape_cast %22 : vector<1x15x64xbf16> to vector<15x64xbf16>
      %24 = arith.extf %23 : vector<15x64xbf16> to vector<15x64xf32>
      %c1 = arith.constant 1 : index
      %c64 = arith.constant 64 : index
      %25 = vector.load %arg6[%c1, %c64] : memref<16x320xf32, #tpu.memory_space<vmem>>, vector<15x64xf32>
      tpu.vector_store %arg6[%c1, %c64], %24 {strides = array<i32>} : memref<16x320xf32, #tpu.memory_space<vmem>>, vector<15x64xf32>,
      %c0_18 = arith.constant 0 : index
      %c0_19 = arith.constant 0 : index
      %c0_20 = arith.constant 0 : index
      %26 = vector.load %arg2[%c0_18, %c0_19, %c0_20] : memref<1x16x64xbf16, #tpu.memory_space<vmem>>, vector<1x16x64xbf16>
      %27 = vector.shape_cast %26 : vector<1x16x64xbf16> to vector<16x64xbf16>
      %28 = arith.extf %27 : vector<16x64xbf16> to vector<16x64xf32>
      %c0_21 = arith.constant 0 : index
      %c128 = arith.constant 128 : index
      %29 = vector.load %arg6[%c0_21, %c128] : memref<16x320xf32, #tpu.memory_space<vmem>>, vector<16x64xf32>
      tpu.vector_store %arg6[%c0_21, %c128], %28 {strides = array<i32>} : memref<16x320xf32, #tpu.memory_space<vmem>>, vector<16x64xf32>,
      %c0_22 = arith.constant 0 : index
      %c1_23 = arith.constant 1 : index
      %c0_24 = arith.constant 0 : index
      %30 = vector.load %arg2[%c0_22, %c1_23, %c0_24] : memref<1x16x64xbf16, #tpu.memory_space<vmem>>, vector<1x15x64xbf16>
      %31 = vector.shape_cast %30 : vector<1x15x64xbf16> to vector<15x64xbf16>
      %32 = arith.extf %31 : vector<15x64xbf16> to vector<15x64xf32>
      %c0_25 = arith.constant 0 : index
      %c192 = arith.constant 192 : index
      %33 = vector.load %arg6[%c0_25, %c192] : memref<16x320xf32, #tpu.memory_space<vmem>>, vector<15x64xf32>
      tpu.vector_store %arg6[%c0_25, %c192], %32 {strides = array<i32>} : memref<16x320xf32, #tpu.memory_space<vmem>>, vector<15x64xf32>,
      %c0_26 = arith.constant 0 : index
      %c2_27 = arith.constant 2 : index
      %c0_28 = arith.constant 0 : index
      %34 = vector.load %arg2[%c0_26, %c2_27, %c0_28] : memref<1x16x64xbf16, #tpu.memory_space<vmem>>, vector<1x14x64xbf16>
      %35 = vector.shape_cast %34 : vector<1x14x64xbf16> to vector<14x64xbf16>
      %36 = arith.extf %35 : vector<14x64xbf16> to vector<14x64xf32>
      %c0_29 = arith.constant 0 : index
      %c256 = arith.constant 256 : index
      %37 = vector.load %arg6[%c0_29, %c256] : memref<16x320xf32, #tpu.memory_space<vmem>>, vector<14x64xf32>
      tpu.vector_store %arg6[%c0_29, %c256], %36 {strides = array<i32>} : memref<16x320xf32, #tpu.memory_space<vmem>>, vector<14x64xf32>,
    } else {
    }
    %c16_i32 = arith.constant 16 : i32
    %3 = arith.muli %arg1, %c16_i32 : i32
    %4 = tpu.assume_multiple %3, 16 : i32
    %5 = arith.index_cast %4 : i32 to index
    %c0 = arith.constant 0 : index
    %6 = vector.load %arg6[%5, %c0] : memref<16x320xf32, #tpu.memory_space<vmem>>, vector<16x320xf32>
    %7 = arith.truncf %6 : vector<16x320xf32> to vector<16x320xbf16>
    %c0_1 = arith.constant 0 : index
    %c0_2 = arith.constant 0 : index
    %8 = vector.load %arg3[%c0_1, %c0_2] : memref<320x128xbf16, #tpu.memory_space<vmem>>, vector<320x128xbf16>
    %cst = arith.constant dense<0.000000e+00> : vector<16x128xf32>
    %9 = tpu.matmul %7, %8, %cst {dimension_numbers = #tpu.dot_dimension_numbers<[1], [0], [0], [1], [0, 0, 1, 1], [], []>} : vector<16x320xbf16>, vector<320x128xbf16>, vector<16x128xf32> -> vector<16x128xf32>
    %c0_3 = arith.constant 0 : index
    %c0_4 = arith.constant 0 : index
    %10 = vector.load %arg4[%c0_3, %c0_4] : memref<1x128xf32, #tpu.memory_space<vmem>>, vector<1x128xf32>
    %11 = vector.broadcast %10 : vector<1x128xf32> to vector<16x128xf32>
    %12 = arith.addf %9, %11 : vector<16x128xf32>
    %c0_5 = arith.constant 0 : index
    %c0_6 = arith.constant 0 : index
    %c0_7 = arith.constant 0 : index
    %13 = vector.load %arg5[%c0_5, %c0_6, %c0_7] : memref<1x16x128xf32, #tpu.memory_space<vmem>>, vector<1x16x128xf32>
    %14 = vector.shape_cast %13 : vector<1x16x128xf32> to vector<16x128xf32>
    %15 = vector.shape_cast %12 : vector<16x128xf32> to vector<1x16x128xf32>
    tpu.vector_store %arg5[%c0_5, %c0_6, %c0_7], %15 {strides = array<i32>} : memref<1x16x128xf32, #tpu.memory_space<vmem>>, vector<1x16x128xf32>,
    return
  }
  func.func @transform_0(%arg0: i32, %arg1: i32) -> (i32, i32, i32) {
    %c0_i32 = arith.constant 0 : i32
    %c0_i32_0 = arith.constant 0 : i32
    %c0_i32_1 = arith.constant 0 : i32
    return %arg0, %c0_i32, %c0_i32_0 : i32, i32, i32
  }
  func.func @transform_1(%arg0: i32, %arg1: i32) -> (i32, i32) {
    %c0_i32 = arith.constant 0 : i32
    %c0_i32_0 = arith.constant 0 : i32
    %c0_i32_1 = arith.constant 0 : i32
    return %c0_i32, %c0_i32_0 : i32, i32
  }
  func.func @transform_2(%arg0: i32, %arg1: i32) -> (i32, i32) {
    %c0_i32 = arith.constant 0 : i32
    %c0_i32_0 = arith.constant 0 : i32
    %c0_i32_1 = arith.constant 0 : i32
    return %c0_i32, %c0_i32_0 : i32, i32
  }
  func.func @transform_3(%arg0: i32, %arg1: i32) -> (i32, i32, i32) {
    %c0_i32 = arith.constant 0 : i32
    %c0_i32_0 = arith.constant 0 : i32
    return %arg0, %arg1, %c0_i32 : i32, i32, i32
  }
}

</mosaic_0001>

<llo_original>
// kernel: tpu_custom_call.1
$region0: #{tpu_custom_call.1}
  #allocation0 [shape = 'u32[]', space=smem, size = 0x4, offset = 0x4, fixed_abs, tag = 'smem constant byte address 0x4 - core index']
  #allocation1 [shape = 'u32[144,128]{1,0:T(1,128)}', space=vmem, size = 0x12000, scoped, tag = 'internal scratch']
  #allocation2 [shape = 'f32[16,320]{1,0:T(8,128)}', space=vmem, size = 0x6000, scoped, tag = 'scratch operand']
  %s0 = inlined_call_operand.hbm [shape: bf16[2,16,64], index: 0, kind: input, shape index: {}]
  %s1 = inlined_call_operand.hbm [shape: bf16[320,128], index: 1, kind: input, shape index: {}]
  %s2 = inlined_call_operand.vmem [shape: f32[1,128], index: 2, kind: input, shape index: {}]
  %s3 = inlined_call_operand.hbm [shape: f32[2,16,128], index: 3, kind: output, shape index: {}]
  %s4 = sld [smem:[#allocation0]]
  $region57: #{tpu_custom_call.1} parent=0
    _
  %s6 = ssub.s32 1, %s4
  %s7 = scalar_select 0, %s6, %s4
  $region1: #{tpu_custom_call.1} parent=0
    #allocation3 [shape = 'u8[8192]{0}', space=vmem, size = 0x2000, scoped, tag = 'input window, operand 0']
    #allocation4 [shape = 's32[2]{0}', space=sflag, size = 0x8, scoped, tag = 'scoped memory for tpu_custom_call.1']
    #allocation5 [shape = 's32[2]{0}', space=sflag, size = 0x8, scoped, tag = 'scoped memory for tpu_custom_call.1']
    #allocation6 [shape = 'u8[81920]{0}', space=vmem, size = 0x14000, scoped, tag = 'input window, operand 1, single buffered']
    #allocation7 [shape = 's32[1]{0}', space=sflag, size = 0x4, scoped, tag = 'scoped memory for tpu_custom_call.1']
    #allocation8 [shape = 'u8[16384]{0}', space=vmem, size = 0x4000, scoped, tag = 'output window, operand 0']
    %8 = vsyncpa [#allocation4], 0
    %s9 = scalar_lea.sflag [#allocation4], 1
    %10 = vsyncpa %s9, 0
    %11 = vsyncpa [#allocation7], 0
    %12 = vsyncpa [#allocation5], 0
    %s13 = scalar_lea.sflag [#allocation5], 1
    %14 = vsyncpa %s13, 0
    loop: start=0, step=1, limit=4
    $region2: #{tpu_custom_call.1} parent=1 // loop_pre_header
      _
    $region3: #{tpu_custom_call.1} parent=1 // loop_header
      %s16 = sphi 0, %s20
      %p17 = scmp.ge.s32.totalorder %s16, 4
      %s23 = sphi 0, %s35
      %s24 = sphi 0, %s31
      %s25 = sphi 0, %s23
      %s26 = sphi 0, %s24
      %s27 = sphi 0, %s25
      %s28 = sphi 0, %s26
      %s38 = sphi 0, %s40
      %s41 = sphi 0, %s38
      %s42 = sphi 0, %s41
      %s58 = sphi 0, %s42
      %s62 = sphi 0, %s62
      %s64 = sphi 0, %s62
      %s65 = sphi 0, %s64
      %s79 = sphi 0, %s65
      %s83 = sphi 0, %s83
      %s85 = sphi 0, %s83
      %s86 = sphi 0, %s85
      %s100 = sphi 0, %s86
      %s108 = sphi 0, %s110
      %s111 = sphi 0, %s108
      %s112 = sphi 0, %s111
      %s128 = sphi 0, %s112
    $region4: #{tpu_custom_call.1} parent=1 // loop_header_branch
      %19 = sbr.rel (%p17) target = $region8
    $region5: #{tpu_custom_call.1} parent=1 // loop_body
      %s21 = ssub.s32 %s16, 1
      %s22 = ssub.s32 %s16, 2
      %s29 = sadd.s32 1, %s24
      %p30 = scmp.ge.s32.totalorder %s29, 1
      %s31 = scalar_select %p30, 0, %s29
      %s32 = sadd.s32 1, %s23
      %s33 = scalar_select %p30, %s32, %s23
      %p34 = scmp.ge.s32.totalorder %s33, 2
      %s35 = scalar_select %p34, 0, %s33
      %s36 = ssub.s32 %s23, %s35
      %p37 = scmp.eq.s32.totalorder %s36, 0
      %s39 = sadd.s32 %s38, 1
      %s40 = scalar_select %p37, %s38, %s39
      %p43 = pneg %p37
      %p44 = scmp.eq.s32.totalorder %s16, 1
      %p45 = por %p43, %p44
      %p46 = scmp.ne.s32.totalorder %s38, %s41
      %p47 = scmp.eq.s32.totalorder %s16, 0
      %p48 = por %p46, %p47
      %p49 = scmp.ne.s32.totalorder %s38, %s41
      %p50 = scmp.eq.s32.totalorder %s21, 1
      %p51 = por %p49, %p50
      %p52 = scmp.ne.s32.totalorder %s41, %s42
      %p53 = scmp.eq.s32.totalorder %s21, 0
      %p54 = por %p52, %p53
      %p55 = scmp.ne.s32.totalorder %s41, %s42
      %p56 = scmp.eq.s32.totalorder %s22, 1
      %p57 = por %p55, %p56
      %p59 = scmp.ne.s32.totalorder %s42, %s58
      %p60 = scmp.eq.s32.totalorder %s22, 0
      %p61 = por %p59, %p60
      %s63 = sadd.s32 %s62, 1
      %p66 = scmp.eq.s32.totalorder %s16, 1
      %p67 = scmp.ne.s32.totalorder %s62, %s64
      %p68 = scmp.eq.s32.totalorder %s16, 0
      %p69 = por %p67, %p68
      %p70 = scmp.ne.s32.totalorder %s62, %s64
      %p71 = scmp.eq.s32.totalorder %s21, 1
      %p72 = por %p70, %p71
      %p73 = scmp.ne.s32.totalorder %s64, %s65
      %p74 = scmp.eq.s32.totalorder %s21, 0
      %p75 = por %p73, %p74
      %p76 = scmp.ne.s32.totalorder %s64, %s65
      %p77 = scmp.eq.s32.totalorder %s22, 1
      %p78 = por %p76, %p77
      %p80 = scmp.ne.s32.totalorder %s65, %s79
      %p81 = scmp.eq.s32.totalorder %s22, 0
      %p82 = por %p80, %p81
      %s84 = sadd.s32 %s83, 1
      %p87 = scmp.eq.s32.totalorder %s16, 1
      %p88 = scmp.ne.s32.totalorder %s83, %s85
      %p89 = scmp.eq.s32.totalorder %s16, 0
      %p90 = por %p88, %p89
      %p91 = scmp.ne.s32.totalorder %s83, %s85
      %p92 = scmp.eq.s32.totalorder %s21, 1
      %p93 = por %p91, %p92
      %p94 = scmp.ne.s32.totalorder %s85, %s86
      %p95 = scmp.eq.s32.totalorder %s21, 0
      %p96 = por %p94, %p95
      %p97 = scmp.ne.s32.totalorder %s85, %s86
      %p98 = scmp.eq.s32.totalorder %s22, 1
      %p99 = por %p97, %p98
      %p101 = scmp.ne.s32.totalorder %s86, %s100
      %p102 = scmp.eq.s32.totalorder %s22, 0
      %p103 = por %p101, %p102
      %s104 = ssub.s32 %s23, %s35
      %s105 = ssub.s32 %s24, %s31
      %s106 = sor.u32 %s104, %s105
      %p107 = scmp.eq.s32.totalorder %s106, 0
      %s109 = sadd.s32 %s108, 1
      %s110 = scalar_select %p107, %s108, %s109
      %p113 = pneg %p107
      %p114 = scmp.eq.s32.totalorder %s16, 1
      %p115 = por %p113, %p114
      %p116 = scmp.ne.s32.totalorder %s108, %s111
      %p117 = scmp.eq.s32.totalorder %s16, 0
      %p118 = por %p116, %p117
      %p119 = scmp.ne.s32.totalorder %s108, %s111
      %p120 = scmp.eq.s32.totalorder %s21, 1
      %p121 = por %p119, %p120
      %p122 = scmp.ne.s32.totalorder %s111, %s112
      %p123 = scmp.eq.s32.totalorder %s21, 0
      %p124 = por %p122, %p123
      %p125 = scmp.ne.s32.totalorder %s111, %s112
      %p126 = scmp.eq.s32.totalorder %s22, 1
      %p127 = por %p125, %p126
      %p129 = scmp.ne.s32.totalorder %s112, %s128
      %p130 = scmp.eq.s32.totalorder %s22, 0
      %p131 = por %p129, %p130
      %p132 = scmp.le.s32.totalorder 1, %s16
      %p133 = scmp.lt.s32.totalorder %s16, 3
      %p134 = pnand %p132, %p133
      %p135 = pneg %p134
      // Predicated region
      $region9: #{tpu_custom_call.1} parent=5 // pred_check
        _
      $region10: #{tpu_custom_call.1} parent=5 // pred_check_branch
        %137 = sbr.rel (%p134) target = $region12
      $region11: #{tpu_custom_call.1} parent=5 // pred_region
        %s138 = ssub.s32 %s16, 1
        // Predicated region
        $region13: #{tpu_custom_call.1} parent=11 // pred_check
          %p139 = pneg %p75
        $region14: #{tpu_custom_call.1} parent=11 // pred_check_branch
          %141 = sbr.rel (%p139) target = $region16
        $region15: #{tpu_custom_call.1} parent=11 // pred_region
          %s143 = ssub.s32 2560, 2560
          %144 = vsyncadd [#allocation7], %s143
          %s145 = sshll.u32 [#allocation6], 4
          %s146 = int_to_ptr.vmem [resolvable:$true] %s145
          %151 = dma.hbm_to_vmem [thread:$0]  %s1, 2560, %s146, [#allocation7], 64, 64, 4
        $region16: #{tpu_custom_call.1} parent=11 // pred_fallthru
          _
        // Predicated region
        $region17: #{tpu_custom_call.1} parent=11 // pred_check
          %p152 = pneg %p96
        $region18: #{tpu_custom_call.1} parent=11 // pred_check_branch
          %154 = sbr.rel (%p152) target = $region20
        $region19: #{tpu_custom_call.1} parent=11 // pred_region
          _
        $region20: #{tpu_custom_call.1} parent=11 // pred_fallthru
          _
      $region12: #{tpu_custom_call.1} parent=5 // pred_fallthru
        _
      %p155 = scmp.lt.s32.totalorder %s16, 2
      // Predicated region
      $region21: #{tpu_custom_call.1} parent=5 // pred_check
        %p156 = pneg %p155
      $region22: #{tpu_custom_call.1} parent=5 // pred_check_branch
        %158 = sbr.rel (%p156) target = $region24
      $region23: #{tpu_custom_call.1} parent=5 // pred_region
        // Predicated region
        $region25: #{tpu_custom_call.1} parent=23 // pred_check
          %p159 = pneg %p48
        $region26: #{tpu_custom_call.1} parent=23 // pred_check_branch
          %161 = sbr.rel (%p159) target = $region28
        $region27: #{tpu_custom_call.1} parent=23 // pred_region
          %s162 = sand.u32 %s38, 1
          %s163 = scalar_lea.sflag [#allocation4], %s162
          %s164 = sand.u32 %s38, 1
          %s165 = smul.addr %s164, 8
          %s166 = scalar_lea.vmem [#allocation3], %s165
          %s168 = ssub.s32 128, 128
          %169 = vsyncadd %s163, %s168
          %s170 = smul.addr %s23, 2
          %s171 = smul.addr %s170, 64
          %s172 = scalar_lea.hbm %s0, %s171
          %s173 = sshll.u32 %s166, 4
          %s174 = int_to_ptr.vmem [resolvable:$true] %s173
          %179 = dma.hbm_to_vmem [thread:$0]  %s172, 128, %s174, %s163, 64, 64, 4
        $region28: #{tpu_custom_call.1} parent=23 // pred_fallthru
          _
      $region24: #{tpu_custom_call.1} parent=5 // pred_fallthru
        _
      %p180 = scmp.le.s32.totalorder 1, %s16
      %p181 = scmp.lt.s32.totalorder %s16, 3
      %p182 = pnand %p180, %p181
      %p183 = pneg %p182
      // Predicated region
      $region29: #{tpu_custom_call.1} parent=5 // pred_check
        _
      $region30: #{tpu_custom_call.1} parent=5 // pred_check_branch
        %185 = sbr.rel (%p182) target = $region32
      $region31: #{tpu_custom_call.1} parent=5 // pred_region
        %s186 = ssub.s32 %s16, 1
        %s187 = sand.u32 %s41, 1
        %s188 = scalar_lea.sflag [#allocation4], %s187
        %s189 = sand.u32 %s41, 1
        %s190 = smul.addr %s189, 8
        %s191 = scalar_lea.vmem [#allocation3], %s190
        // Predicated region
        $region33: #{tpu_custom_call.1} parent=31 // pred_check
          %p192 = pneg %p54
        $region34: #{tpu_custom_call.1} parent=31 // pred_check_branch
          %194 = sbr.rel (%p192) target = $region36
        $region35: #{tpu_custom_call.1} parent=31 // pred_region
          %195 = dma.done %s188, 128
        $region36: #{tpu_custom_call.1} parent=31 // pred_fallthru
          _
        // Predicated region
        $region37: #{tpu_custom_call.1} parent=31 // pred_check
          %p196 = pneg %p75
        $region38: #{tpu_custom_call.1} parent=31 // pred_check_branch
          %198 = sbr.rel (%p196) target = $region40
        $region39: #{tpu_custom_call.1} parent=31 // pred_region
          %199 = dma.done [#allocation7], 2560
        $region40: #{tpu_custom_call.1} parent=31 // pred_fallthru
          _
        %s200 = sand.u32 %s41, 1
        %s201 = scalar_lea.sflag [#allocation4], %s200
        %s202 = sand.u32 %s41, 1
        %s203 = smul.addr %s202, 8
        %s204 = scalar_lea.vmem [#allocation3], %s203
        %p205 = pneg %p54
        %p206 = pneg %p51
        %p207 = pneg %p75
        %p208 = pneg %p72
        %p209 = pneg %p96
        %p210 = pneg %p93
        %p211 = pneg %p124
        %p212 = pneg %p121
        %s213 = sand.u32 %s111, 1
        %s214 = scalar_lea.sflag [#allocation5], %s213
        %s215 = sand.u32 %s111, 1
        %s216 = smul.addr %s215, 16
        %s217 = scalar_lea.vmem [#allocation8], %s216
        %s218 = smul.u32 2, %s26
        %p220 = scmp.eq.s32.totalorder %s26, 0
        // Predicated region
        $region41: #{tpu_custom_call.1} parent=31 // pred_check
          %p221 = pneg %p220
        $region42: #{tpu_custom_call.1} parent=31 // pred_check_branch
          %223 = sbr.rel (%p221) target = $region44
        $region43: #{tpu_custom_call.1} parent=31 // pred_region
          %224 = vst [vmem:[#allocation2] sm:$0xff] 0.0
          %225 = vst [vmem:[#allocation2 + $0x8] sm:$0xff] 0.0
          %vm226 = vcmask 523264
          %227 = vst.msk [vmem:[#allocation2 + $0x10] sm:$0xff] %vm226, 0.0
          %228 = vst [vmem:[#allocation2 + $0x18] sm:$0xff] 0.0
          %229 = vst [vmem:[#allocation2 + $0x20] sm:$0xff] 0.0
          %230 = vst.msk [vmem:[#allocation2 + $0x28] sm:$0xff] %vm226, 0.0
          %v231 = vld [vmem:[%s191] sm:$0xf]
          %v232 = vld [vmem:[%s191 + $0x4] sm:$0x7]
          %v233 = vunpack.c.l.bf16 %v231
          %v234 = vunpack.c.l.bf16 %v232
          %vm237 = vcmask 1041408
          %v238 = vrot.slane %v233, 6
          %v239 = vrot.slane %v234, 6
          %v240 = vsel %vm237, %v238, %v239
          %vm243 = vcmask 523266
          %244 = vst.msk [vmem:[#allocation2] sm:$0xfc] %vm243, %v238
          %245 = vst.msk [vmem:[#allocation2 + $0x18] sm:$0xff] %vm226, %v240
          %v246 = vld [vmem:[%s191] sm:$0xf]
          %v247 = vld [vmem:[%s191 + $0x4] sm:$0xf]
          %v248 = vunpack.c.l.bf16 %v246
          %v249 = vunpack.c.l.bf16 %v247
          %vm252 = vcmask 1040384
          %v253 = vrot.slane %v248, 7
          %v254 = vrot.slane %v249, 7
          %v255 = vsel %vm252, %v253, %v254
          %256 = vrot.lane.b32.xlu0 %v253, 64
          %v257 = vpop.permute.xlu0 %256
          %258 = vrot.lane.b32.xlu0 %v255, 64
          %v259 = vpop.permute.xlu0 %258
          %vm262 = vcmask 1048065
          %263 = vst.msk [vmem:[#allocation2] sm:$0xfe] %vm262, %v257
          %vm264 = vcmask 1048064
          %265 = vst.msk [vmem:[#allocation2 + $0x18] sm:$0xff] %vm264, %v259
          %v266 = vld [vmem:[%s191] sm:$0xf]
          %v267 = vld [vmem:[%s191 + $0x4] sm:$0xf]
          %v268 = vunpack.c.l.bf16 %v266
          %v269 = vunpack.c.l.bf16 %v267
          %270 = vst.msk [vmem:[#allocation2 + $0x8] sm:$0xff] %vm226, %v268
          %271 = vst.msk [vmem:[#allocation2 + $0x20] sm:$0xff] %vm226, %v269
          %v272 = vld [vmem:[%s191] sm:$0xf]
          %v273 = vld [vmem:[%s191 + $0x4] sm:$0xf]
          %v274 = vunpack.c.l.bf16 %v272
          %v275 = vunpack.c.l.bf16 %v273
          %vm278 = vcmask 1046528
          %v279 = vrot.slane %v274, 1
          %v280 = vrot.slane %v275, 1
          %v281 = vsel %vm278, %v279, %v280
          %282 = vrot.lane.b32.xlu0 %v281, 64
          %v283 = vpop.permute.xlu0 %282
          %284 = vrot.lane.b32.xlu0 %v280, 64
          %v285 = vpop.permute.xlu0 %284
          %288 = vst.msk [vmem:[#allocation2 + $0x8] sm:$0xff] %vm264, %v283
          %vm289 = vcmask 1047040
          %290 = vst.msk [vmem:[#allocation2 + $0x20] sm:$0x7f] %vm289, %v285
          %v291 = vld [vmem:[%s191] sm:$0xe]
          %v292 = vld [vmem:[%s191 + $0x4] sm:$0xf]
          %v293 = vunpack.c.l.bf16 %v291
          %v294 = vunpack.c.l.bf16 %v292
          %vm297 = vcmask 1045504
          %v298 = vrot.slane %v293, 2
          %v299 = vrot.slane %v294, 2
          %v300 = vsel %vm297, %v298, %v299
          %303 = vst.msk [vmem:[#allocation2 + $0x10] sm:$0xff] %vm226, %v300
          %vm304 = vcmask 521216
          %305 = vst.msk [vmem:[#allocation2 + $0x28] sm:$0x3f] %vm304, %v299
        $region44: #{tpu_custom_call.1} parent=31 // pred_fallthru
          _
        %s306 = smul.u32 %s26, 16
        %s307 = sshra.s32 %s306, 3
        %s308 = sand.u32 %s306, 7
        %s309 = smul.u32 %s307, 3
        %s310 = smul.addr %s309, 8
        %s311 = scalar_lea.vmem [#allocation2], %s310
        %v312 = vld [vmem:[%s311] sm:$0xff]
        %v313 = vld [vmem:[%s311 + $0x8] sm:$0xff]
        %v314 = vld [vmem:[%s311 + $0x10] sm:$0xff]
        %v315 = vld [vmem:[%s311 + $0x18] sm:$0xff]
        %v316 = vld [vmem:[%s311 + $0x20] sm:$0xff]
        %v317 = vld [vmem:[%s311 + $0x28] sm:$0xff]
        %v318 = vpack.c.bf16 %v315, %v312
        %v319 = vpack.c.bf16 %v316, %v313
        %v320 = vpack.c.bf16 %v317, %v314
        %v321 = vld [vmem:[#allocation6] sm:$0xf]
        %v322 = vld [vmem:[#allocation6 + $0x4] sm:$0xf]
        %v323 = vld [vmem:[#allocation6 + $0x8] sm:$0xf]
        %v324 = vld [vmem:[#allocation6 + $0xc] sm:$0xf]
        %v325 = vld [vmem:[#allocation6 + $0x10] sm:$0xf]
        %v326 = vld [vmem:[#allocation6 + $0x14] sm:$0xf]
        %v327 = vld [vmem:[#allocation6 + $0x18] sm:$0xf]
        %v328 = vld [vmem:[#allocation6 + $0x1c] sm:$0xf]
        %v329 = vld [vmem:[#allocation6 + $0x20] sm:$0xf]
        %v330 = vld [vmem:[#allocation6 + $0x24] sm:$0xf]
        %v331 = vld [vmem:[#allocation6 + $0x28] sm:$0xf]
        %v332 = vld [vmem:[#allocation6 + $0x2c] sm:$0xf]
        %v333 = vld [vmem:[#allocation6 + $0x30] sm:$0xf]
        %v334 = vld [vmem:[#allocation6 + $0x34] sm:$0xf]
        %v335 = vld [vmem:[#allocation6 + $0x38] sm:$0xf]
        %v336 = vld [vmem:[#allocation6 + $0x3c] sm:$0xf]
        %v337 = vld [vmem:[#allocation6 + $0x40] sm:$0xf]
        %v338 = vld [vmem:[#allocation6 + $0x44] sm:$0xf]
        %v339 = vld [vmem:[#allocation6 + $0x48] sm:$0xf]
        %v340 = vld [vmem:[#allocation6 + $0x4c] sm:$0xf]
        %v341 = vld [vmem:[#allocation6 + $0x50] sm:$0xf]
        %v342 = vld [vmem:[#allocation6 + $0x54] sm:$0xf]
        %v343 = vld [vmem:[#allocation6 + $0x58] sm:$0xf]
        %v344 = vld [vmem:[#allocation6 + $0x5c] sm:$0xf]
        %v345 = vld [vmem:[#allocation6 + $0x60] sm:$0xf]
        %v346 = vld [vmem:[#allocation6 + $0x64] sm:$0xf]
        %v347 = vld [vmem:[#allocation6 + $0x68] sm:$0xf]
        %v348 = vld [vmem:[#allocation6 + $0x6c] sm:$0xf]
        %v349 = vld [vmem:[#allocation6 + $0x70] sm:$0xf]
        %v350 = vld [vmem:[#allocation6 + $0x74] sm:$0xf]
        %v351 = vld [vmem:[#allocation6 + $0x78] sm:$0xf]
        %v352 = vld [vmem:[#allocation6 + $0x7c] sm:$0xf]
        %v353 = vld [vmem:[#allocation6 + $0x80] sm:$0xf]
        %v354 = vld [vmem:[#allocation6 + $0x84] sm:$0xf]
        %v355 = vld [vmem:[#allocation6 + $0x88] sm:$0xf]
        %v356 = vld [vmem:[#allocation6 + $0x8c] sm:$0xf]
        %v357 = vld [vmem:[#allocation6 + $0x90] sm:$0xf]
        %v358 = vld [vmem:[#allocation6 + $0x94] sm:$0xf]
        %v359 = vld [vmem:[#allocation6 + $0x98] sm:$0xf]
        %v360 = vld [vmem:[#allocation6 + $0x9c] sm:$0xf]
        %v361 = vld [vmem:[%s2] sm:$0x1]
        %v363 = vlaneseq
        %v364 = vshrl.u32 %v363, 7
        %v365 = vsub.s32 0, %v364
        %v366 = vrot.slane %v361, %v365
        %v408 = vunpack.c.l.b16 %v321
        %v409 = vunpack.c.l.b16 %v322
        %v410 = vunpack.c.l.b16 %v323
        %v411 = vunpack.c.l.b16 %v324
        %v412 = vunpack.c.l.b16 %v325
        %v413 = vunpack.c.l.b16 %v326
        %v414 = vunpack.c.l.b16 %v327
        %v415 = vunpack.c.l.b16 %v328
        %v416 = vunpack.c.l.b16 %v329
        %v417 = vunpack.c.l.b16 %v330
        %v418 = vunpack.c.l.b16 %v331
        %v419 = vunpack.c.l.b16 %v332
        %v420 = vunpack.c.l.b16 %v333
        %v421 = vunpack.c.l.b16 %v334
        %v422 = vunpack.c.l.b16 %v335
        %v423 = vunpack.c.l.b16 %v336
        %v424 = vunpack.c.l.b16 %v337
        %v425 = vunpack.c.l.b16 %v338
        %v426 = vunpack.c.l.b16 %v339
        %v427 = vunpack.c.l.b16 %v340
        %v428 = vunpack.c.l.b16 %v341
        %v429 = vunpack.c.l.b16 %v342
        %v430 = vunpack.c.l.b16 %v343
        %v431 = vunpack.c.l.b16 %v344
        %v432 = vunpack.c.l.b16 %v345
        %v433 = vunpack.c.l.b16 %v346
        %v434 = vunpack.c.l.b16 %v347
        %v435 = vunpack.c.l.b16 %v348
        %v436 = vunpack.c.l.b16 %v349
        %v437 = vunpack.c.l.b16 %v350
        %v438 = vunpack.c.l.b16 %v351
        %v439 = vunpack.c.l.b16 %v352
        %v440 = vunpack.c.l.b16 %v353
        %v441 = vunpack.c.l.b16 %v354
        %v442 = vunpack.c.l.b16 %v355
        %v443 = vunpack.c.l.b16 %v356
        %v444 = vunpack.c.l.b16 %v357
        %v445 = vunpack.c.l.b16 %v358
        %v446 = vunpack.c.l.b16 %v359
        %v447 = vunpack.c.l.b16 %v360
        %v448 = vpack.c.b16 %v409, %v408
        %v449 = vpack.c.b16 %v411, %v410
        %v450 = vpack.c.b16 %v413, %v412
        %v451 = vpack.c.b16 %v415, %v414
        %v452 = vpack.c.b16 %v417, %v416
        %v453 = vpack.c.b16 %v419, %v418
        %v454 = vpack.c.b16 %v421, %v420
        %v455 = vpack.c.b16 %v423, %v422
        %v456 = vpack.c.b16 %v425, %v424
        %v457 = vpack.c.b16 %v427, %v426
        %v458 = vpack.c.b16 %v429, %v428
        %v459 = vpack.c.b16 %v431, %v430
        %v460 = vpack.c.b16 %v433, %v432
        %v461 = vpack.c.b16 %v435, %v434
        %v462 = vpack.c.b16 %v437, %v436
        %v463 = vpack.c.b16 %v439, %v438
        %v464 = vpack.c.b16 %v441, %v440
        %v465 = vpack.c.b16 %v443, %v442
        %v466 = vpack.c.b16 %v445, %v444
        %v467 = vpack.c.b16 %v447, %v446
        %vm488 = vcmask 523264
        %v490 = vsel %vm488, %v320, 0
        %492 = vmatprep.subr.bf16.mxu0 0
        %493 = vmatpush1.bf16.msra.mxu0 %v448
        %494 = vmatprep.subr.bf16.mxu0 0
        %495 = vmatpush1.bf16.msra.mxu0 %v449
        %496 = vmatprep.subr.bf16.mxu0 0
        %497 = vmatpush1.bf16.msra.mxu0 %v450
        %498 = vmatprep.subr.bf16.mxu0 0
        %499 = vmatpush1.bf16.msra.mxu0 %v451
        %500 = vmatprep.subr.bf16.mxu0 0
        %501 = vmatpush1.bf16.msra.mxu0 %v452
        %502 = vmatprep.subr.bf16.mxu0 0
        %503 = vmatpush1.bf16.msra.mxu0 %v453
        %504 = vmatprep.subr.bf16.mxu0 0
        %505 = vmatpush1.bf16.msra.mxu0 %v454
        %506 = vmatprep.subr.bf16.mxu0 0
        %507 = vmatpush1.bf16.msra.mxu0 %v455
        %508 = vmatprep.subr.bf16.mxu0 0
        %509 = vmatpush1.bf16.msra.mxu0 %v456
        %510 = vmatprep.subr.bf16.mxu0 0
        %511 = vmatpush1.bf16.msra.mxu0 %v457
        %512 = vmatprep.subr.bf16.mxu0 0
        %513 = vmatpush1.bf16.msra.mxu0 %v458
        %514 = vmatprep.subr.bf16.mxu0 0
        %515 = vmatpush1.bf16.msra.mxu0 %v459
        %516 = vmatprep.subr.bf16.mxu0 0
        %517 = vmatpush1.bf16.msra.mxu0 %v460
        %518 = vmatprep.subr.bf16.mxu0 0
        %519 = vmatpush1.bf16.msra.mxu0 %v461
        %520 = vmatprep.subr.bf16.mxu0 0
        %521 = vmatpush1.bf16.msra.mxu0 %v462
        %522 = vmatprep.subr.bf16.mxu0 0
        %523 = vmatpush1.bf16.msra.mxu0 %v463
        %524 = vmatprep.mubr.bf16.mxu0 %v319
        %525 = vmatmul.mubr.bf16.gmra.mrb[0].mxu0 %v318
        %v526 = vpop.f32.mrb[0].mxu0
        %v527 = vadd.f32 %v366, %v526
        %v528 = vpop.f32.mrb[0].mxu0
        %v529 = vpop.f32.mrb[0].mxu0
        %v530 = vadd.f32 %v366, %v529
        %v531 = vpop.f32.mrb[0].mxu0
        %532 = vdwg.mxu0
        %533 = vmatprep.subr.bf16.mxu0 0
        %534 = vmatpush1.bf16.msra.mxu0 %v464
        %535 = vmatprep.subr.bf16.mxu0 0
        %536 = vmatpush1.bf16.msra.mxu0 %v465
        %537 = vmatprep.subr.bf16.mxu0 0
        %538 = vmatpush1.bf16.msra.mxu0 %v466
        %539 = vmatprep.subr.bf16.mxu0 0
        %540 = vmatpush1.bf16.msra.mxu0 %v467
        %541 = vmatprep.subr.bf16.mxu0 0
        %542 = vmatpush1.bf16.msra.mxu0 0
        %543 = vmatprep.subr.bf16.mxu0 0
        %544 = vmatpush1.bf16.msra.mxu0 0
        %545 = vmatprep.subr.bf16.mxu0 0
        %546 = vmatpush1.bf16.msra.mxu0 0
        %547 = vmatprep.subr.bf16.mxu0 0
        %548 = vmatpush1.bf16.msra.mxu0 0
        %549 = vmatprep.subr.bf16.mxu0 0
        %550 = vmatpush1.bf16.msra.mxu0 0
        %551 = vmatprep.subr.bf16.mxu0 0
        %552 = vmatpush1.bf16.msra.mxu0 0
        %553 = vmatprep.subr.bf16.mxu0 0
        %554 = vmatpush1.bf16.msra.mxu0 0
        %555 = vmatprep.subr.bf16.mxu0 0
        %556 = vmatpush1.bf16.msra.mxu0 0
        %557 = vmatprep.subr.bf16.mxu0 0
        %558 = vmatpush1.bf16.msra.mxu0 0
        %559 = vmatprep.subr.bf16.mxu0 0
        %560 = vmatpush1.bf16.msra.mxu0 0
        %561 = vmatprep.subr.bf16.mxu0 0
        %562 = vmatpush1.bf16.msra.mxu0 0
        %563 = vmatprep.subr.bf16.mxu0 0
        %564 = vmatpush1.bf16.msra.mxu0 0
        %565 = vmatprep.mubr.bf16.mxu0 0
        %566 = vmatmul.mubr.bf16.gmra.mrb[0].mxu0 %v490
        %v567 = vpop.f32.mrb[0].mxu0
        %v568 = vadd.f32 %v527, %v567
        %v569 = vpop.f32.mrb[0].mxu0
        %v570 = vpop.f32.mrb[0].mxu0
        %v571 = vadd.f32 %v530, %v570
        %v572 = vpop.f32.mrb[0].mxu0
        %573 = vdwg.mxu0
        %574 = vst [vmem:[%s217] sm:$0xff] %v568
        %575 = vst [vmem:[%s217 + $0x8] sm:$0xff] %v571
        %s576 = sand.u32 %s111, 1
        %s577 = scalar_lea.sflag [#allocation5], %s576
        %s578 = sand.u32 %s111, 1
        %s579 = smul.addr %s578, 16
        %s580 = scalar_lea.vmem [#allocation8], %s579
        // Predicated region
        $region45: #{tpu_custom_call.1} parent=31 // pred_check
          %p581 = pneg %p121
        $region46: #{tpu_custom_call.1} parent=31 // pred_check_branch
          %583 = sbr.rel (%p581) target = $region48
        $region47: #{tpu_custom_call.1} parent=31 // pred_region
          %s584 = smul.u32 2, %s26
          %s586 = ssub.s32 256, 256
          %587 = vsyncadd %s577, %s586
          %s588 = smul.addr %s25, 2
          %s589 = sadd.s32 %s584, %s588
          %s590 = smul.addr %s589, 128
          %s591 = scalar_lea.hbm %s3, %s590
          %s592 = sshll.u32 %s580, 4
          %s593 = int_to_ptr.vmem [resolvable:$true] %s592
          %598 = dma.vmem_to_hbm [thread:$0]  %s593, 256, %s591, %s577, 128, 128, 8
        $region48: #{tpu_custom_call.1} parent=31 // pred_fallthru
          _
      $region32: #{tpu_custom_call.1} parent=5 // pred_fallthru
        _
      %p599 = scmp.le.s32.totalorder 2, %s16
      // Predicated region
      $region49: #{tpu_custom_call.1} parent=5 // pred_check
        %p600 = pneg %p599
      $region50: #{tpu_custom_call.1} parent=5 // pred_check_branch
        %602 = sbr.rel (%p600) target = $region52
      $region51: #{tpu_custom_call.1} parent=5 // pred_region
        %s603 = ssub.s32 %s16, 2
        // Predicated region
        $region53: #{tpu_custom_call.1} parent=51 // pred_check
          %p604 = pneg %p127
        $region54: #{tpu_custom_call.1} parent=51 // pred_check_branch
          %606 = sbr.rel (%p604) target = $region56
        $region55: #{tpu_custom_call.1} parent=51 // pred_region
          %s607 = sand.u32 %s112, 1
          %s608 = scalar_lea.sflag [#allocation5], %s607
          %s609 = sand.u32 %s112, 1
          %s610 = smul.addr %s609, 16
          %s611 = scalar_lea.vmem [#allocation8], %s610
          %612 = dma.done %s608, 256
        $region56: #{tpu_custom_call.1} parent=51 // pred_fallthru
          _
      $region52: #{tpu_custom_call.1} parent=5 // pred_fallthru
        _
    $region6: #{tpu_custom_call.1} parent=1 // loop_footer
      %s20 = sadd.s32 1, %s16
    $region7: #{tpu_custom_call.1} parent=1 // loop_footer_branch
      %15 = sbr.rel target = $region3
    $region8: #{tpu_custom_call.1} parent=1 // loop_exit
      _
    %613 = vsyncpa [#allocation4], 1
    %s614 = scalar_lea.sflag [#allocation4], 1
    %615 = vsyncpa %s614, 1
    %616 = vsyncpa [#allocation7], 1
    %617 = vsyncpa [#allocation5], 1
    %s618 = scalar_lea.sflag [#allocation5], 1
    %619 = vsyncpa %s618, 1

// kernel: tpu_custom_call.1
$region0: #{tpu_custom_call.1}
  #allocation0 [shape = 'u32[]', space=smem, size = 0x4, offset = 0x4, fixed_abs, tag = 'smem constant byte address 0x4 - core index']
  #allocation1 [shape = 'u32[144,128]{1,0:T(1,128)}', space=vmem, size = 0x12000, scoped, tag = 'internal scratch']
  #allocation2 [shape = 'f32[16,320]{1,0:T(8,128)}', space=vmem, size = 0x6000, scoped, tag = 'scratch operand']
  %s0 = inlined_call_operand.hbm [shape: bf16[2,16,64], index: 0, kind: input, shape index: {}]
  %s1 = inlined_call_operand.hbm [shape: bf16[320,128], index: 1, kind: input, shape index: {}]
  %s2 = inlined_call_operand.vmem [shape: f32[1,128], index: 2, kind: input, shape index: {}]
  %s3 = inlined_call_operand.hbm [shape: f32[2,16,128], index: 3, kind: output, shape index: {}]
  %s4 = sld [smem:[#allocation0]]
  $region57: #{tpu_custom_call.1} parent=0
    _
  %s6 = ssub.s32 1, %s4
  %s7 = scalar_select 0, %s6, %s4
  $region1: #{tpu_custom_call.1} parent=0
    #allocation3 [shape = 'u8[8192]{0}', space=vmem, size = 0x2000, scoped, tag = 'input window, operand 0']
    #allocation4 [shape = 's32[2]{0}', space=sflag, size = 0x8, scoped, tag = 'scoped memory for tpu_custom_call.1']
    #allocation5 [shape = 's32[2]{0}', space=sflag, size = 0x8, scoped, tag = 'scoped memory for tpu_custom_call.1']
    #allocation6 [shape = 'u8[81920]{0}', space=vmem, size = 0x14000, scoped, tag = 'input window, operand 1, single buffered']
    #allocation7 [shape = 's32[1]{0}', space=sflag, size = 0x4, scoped, tag = 'scoped memory for tpu_custom_call.1']
    #allocation8 [shape = 'u8[16384]{0}', space=vmem, size = 0x4000, scoped, tag = 'output window, operand 0']
    %8 = vsyncpa [#allocation4], 0
    %s9 = scalar_lea.sflag [#allocation4], 1
    %10 = vsyncpa %s9, 0
    %11 = vsyncpa [#allocation7], 0
    %12 = vsyncpa [#allocation5], 0
    %s13 = scalar_lea.sflag [#allocation5], 1
    %14 = vsyncpa %s13, 0
    loop: start=0, step=1, limit=4
    $region2: #{tpu_custom_call.1} parent=1 // loop_pre_header
      _
    $region3: #{tpu_custom_call.1} parent=1 // loop_header
      %s16 = sphi 0, %s20
      %p17 = scmp.ge.s32.totalorder %s16, 4
      %s23 = sphi 0, %s35
      %s24 = sphi 0, %s31
      %s25 = sphi 0, %s23
      %s26 = sphi 0, %s24
      %s27 = sphi 0, %s25
      %s28 = sphi 0, %s26
      %s38 = sphi 0, %s40
      %s41 = sphi 0, %s38
      %s42 = sphi 0, %s41
      %s58 = sphi 0, %s42
      %s62 = sphi 0, %s62
      %s64 = sphi 0, %s62
      %s65 = sphi 0, %s64
      %s79 = sphi 0, %s65
      %s83 = sphi 0, %s83
      %s85 = sphi 0, %s83
      %s86 = sphi 0, %s85
      %s100 = sphi 0, %s86
      %s108 = sphi 0, %s110
      %s111 = sphi 0, %s108
      %s112 = sphi 0, %s111
      %s128 = sphi 0, %s112
    $region4: #{tpu_custom_call.1} parent=1 // loop_header_branch
      %19 = sbr.rel (%p17) target = $region8
    $region5: #{tpu_custom_call.1} parent=1 // loop_body
      %s21 = ssub.s32 %s16, 1
      %s22 = ssub.s32 %s16, 2
      %s29 = sadd.s32 1, %s24
      %p30 = scmp.ge.s32.totalorder %s29, 1
      %s31 = scalar_select %p30, 0, %s29
      %s32 = sadd.s32 1, %s23
      %s33 = scalar_select %p30, %s32, %s23
      %p34 = scmp.ge.s32.totalorder %s33, 2
      %s35 = scalar_select %p34, 0, %s33
      %s36 = ssub.s32 %s23, %s35
      %p37 = scmp.eq.s32.totalorder %s36, 0
      %s39 = sadd.s32 %s38, 1
      %s40 = scalar_select %p37, %s38, %s39
      %p43 = pneg %p37
      %p44 = scmp.eq.s32.totalorder %s16, 1
      %p45 = por %p43, %p44
      %p46 = scmp.ne.s32.totalorder %s38, %s41
      %p47 = scmp.eq.s32.totalorder %s16, 0
      %p48 = por %p46, %p47
      %p49 = scmp.ne.s32.totalorder %s38, %s41
      %p50 = scmp.eq.s32.totalorder %s21, 1
      %p51 = por %p49, %p50
      %p52 = scmp.ne.s32.totalorder %s41, %s42
      %p53 = scmp.eq.s32.totalorder %s21, 0
      %p54 = por %p52, %p53
      %p55 = scmp.ne.s32.totalorder %s41, %s42
      %p56 = scmp.eq.s32.totalorder %s22, 1
      %p57 = por %p55, %p56
      %p59 = scmp.ne.s32.totalorder %s42, %s58
      %p60 = scmp.eq.s32.totalorder %s22, 0
      %p61 = por %p59, %p60
      %s63 = sadd.s32 %s62, 1
      %p66 = scmp.eq.s32.totalorder %s16, 1
      %p67 = scmp.ne.s32.totalorder %s62, %s64
      %p68 = scmp.eq.s32.totalorder %s16, 0
      %p69 = por %p67, %p68
      %p70 = scmp.ne.s32.totalorder %s62, %s64
      %p71 = scmp.eq.s32.totalorder %s21, 1
      %p72 = por %p70, %p71
      %p73 = scmp.ne.s32.totalorder %s64, %s65
      %p74 = scmp.eq.s32.totalorder %s21, 0
      %p75 = por %p73, %p74
      %p76 = scmp.ne.s32.totalorder %s64, %s65
      %p77 = scmp.eq.s32.totalorder %s22, 1
      %p78 = por %p76, %p77
      %p80 = scmp.ne.s32.totalorder %s65, %s79
      %p81 = scmp.eq.s32.totalorder %s22, 0
      %p82 = por %p80, %p81
      %s84 = sadd.s32 %s83, 1
      %p87 = scmp.eq.s32.totalorder %s16, 1
      %p88 = scmp.ne.s32.totalorder %s83, %s85
      %p89 = scmp.eq.s32.totalorder %s16, 0
      %p90 = por %p88, %p89
      %p91 = scmp.ne.s32.totalorder %s83, %s85
      %p92 = scmp.eq.s32.totalorder %s21, 1
      %p93 = por %p91, %p92
      %p94 = scmp.ne.s32.totalorder %s85, %s86
      %p95 = scmp.eq.s32.totalorder %s21, 0
      %p96 = por %p94, %p95
      %p97 = scmp.ne.s32.totalorder %s85, %s86
      %p98 = scmp.eq.s32.totalorder %s22, 1
      %p99 = por %p97, %p98
      %p101 = scmp.ne.s32.totalorder %s86, %s100
      %p102 = scmp.eq.s32.totalorder %s22, 0
      %p103 = por %p101, %p102
      %s104 = ssub.s32 %s23, %s35
      %s105 = ssub.s32 %s24, %s31
      %s106 = sor.u32 %s104, %s105
      %p107 = scmp.eq.s32.totalorder %s106, 0
      %s109 = sadd.s32 %s108, 1
      %s110 = scalar_select %p107, %s108, %s109
      %p113 = pneg %p107
      %p114 = scmp.eq.s32.totalorder %s16, 1
      %p115 = por %p113, %p114
      %p116 = scmp.ne.s32.totalorder %s108, %s111
      %p117 = scmp.eq.s32.totalorder %s16, 0
      %p118 = por %p116, %p117
      %p119 = scmp.ne.s32.totalorder %s108, %s111
      %p120 = scmp.eq.s32.totalorder %s21, 1
      %p121 = por %p119, %p120
      %p122 = scmp.ne.s32.totalorder %s111, %s112
      %p123 = scmp.eq.s32.totalorder %s21, 0
      %p124 = por %p122, %p123
      %p125 = scmp.ne.s32.totalorder %s111, %s112
      %p126 = scmp.eq.s32.totalorder %s22, 1
      %p127 = por %p125, %p126
      %p129 = scmp.ne.s32.totalorder %s112, %s128
      %p130 = scmp.eq.s32.totalorder %s22, 0
      %p131 = por %p129, %p130
      %p132 = scmp.le.s32.totalorder 1, %s16
      %p133 = scmp.lt.s32.totalorder %s16, 3
      %p134 = pnand %p132, %p133
      %p135 = pneg %p134
      // Predicated region
      $region9: #{tpu_custom_call.1} parent=5 // pred_check
        _
      $region10: #{tpu_custom_call.1} parent=5 // pred_check_branch
        %137 = sbr.rel (%p134) target = $region12
      $region11: #{tpu_custom_call.1} parent=5 // pred_region
        %s138 = ssub.s32 %s16, 1
        // Predicated region
        $region13: #{tpu_custom_call.1} parent=11 // pred_check
          %p139 = pneg %p75
        $region14: #{tpu_custom_call.1} parent=11 // pred_check_branch
          %141 = sbr.rel (%p139) target = $region16
        $region15: #{tpu_custom_call.1} parent=11 // pred_region
          %s143 = ssub.s32 2560, 2560
          %144 = vsyncadd [#allocation7], %s143
          %s145 = sshll.u32 [#allocation6], 4
          %s146 = int_to_ptr.vmem [resolvable:$true] %s145
          %151 = dma.hbm_to_vmem [thread:$0]  %s1, 2560, %s146, [#allocation7], 64, 64, 4
        $region16: #{tpu_custom_call.1} parent=11 // pred_fallthru
          _
        // Predicated region
        $region17: #{tpu_custom_call.1} parent=11 // pred_check
          %p152 = pneg %p96
        $region18: #{tpu_custom_call.1} parent=11 // pred_check_branch
          %154 = sbr.rel (%p152) target = $region20
        $region19: #{tpu_custom_call.1} parent=11 // pred_region
          _
        $region20: #{tpu_custom_call.1} parent=11 // pred_fallthru
          _
      $region12: #{tpu_custom_call.1} parent=5 // pred_fallthru
        _
      %p155 = scmp.lt.s32.totalorder %s16, 2
      // Predicated region
      $region21: #{tpu_custom_call.1} parent=5 // pred_check
        %p156 = pneg %p155
      $region22: #{tpu_custom_call.1} parent=5 // pred_check_branch
        %158 = sbr.rel (%p156) target = $region24
      $region23: #{tpu_custom_call.1} parent=5 // pred_region
        // Predicated region
        $region25: #{tpu_custom_call.1} parent=23 // pred_check
          %p159 = pneg %p48
        $region26: #{tpu_custom_call.1} parent=23 // pred_check_branch
          %161 = sbr.rel (%p159) target = $region28
        $region27: #{tpu_custom_call.1} parent=23 // pred_region
          %s162 = sand.u32 %s38, 1
          %s163 = scalar_lea.sflag [#allocation4], %s162
          %s164 = sand.u32 %s38, 1
          %s165 = smul.addr %s164, 8
          %s166 = scalar_lea.vmem [#allocation3], %s165
          %s168 = ssub.s32 128, 128
          %169 = vsyncadd %s163, %s168
          %s170 = smul.addr %s23, 2
          %s171 = smul.addr %s170, 64
          %s172 = scalar_lea.hbm %s0, %s171
          %s173 = sshll.u32 %s166, 4
          %s174 = int_to_ptr.vmem [resolvable:$true] %s173
          %179 = dma.hbm_to_vmem [thread:$0]  %s172, 128, %s174, %s163, 64, 64, 4
        $region28: #{tpu_custom_call.1} parent=23 // pred_fallthru
          _
      $region24: #{tpu_custom_call.1} parent=5 // pred_fallthru
        _
      %p180 = scmp.le.s32.totalorder 1, %s16
      %p181 = scmp.lt.s32.totalorder %s16, 3
      %p182 = pnand %p180, %p181
      %p183 = pneg %p182
      // Predicated region
      $region29: #{tpu_custom_call.1} parent=5 // pred_check
        _
      $region30: #{tpu_custom_call.1} parent=5 // pred_check_branch
        %185 = sbr.rel (%p182) target = $region32
      $region31: #{tpu_custom_call.1} parent=5 // pred_region
        %s186 = ssub.s32 %s16, 1
        %s187 = sand.u32 %s41, 1
        %s188 = scalar_lea.sflag [#allocation4], %s187
        %s189 = sand.u32 %s41, 1
        %s190 = smul.addr %s189, 8
        %s191 = scalar_lea.vmem [#allocation3], %s190
        // Predicated region
        $region33: #{tpu_custom_call.1} parent=31 // pred_check
          %p192 = pneg %p54
        $region34: #{tpu_custom_call.1} parent=31 // pred_check_branch
          %194 = sbr.rel (%p192) target = $region36
        $region35: #{tpu_custom_call.1} parent=31 // pred_region
          %195 = dma.done %s188, 128
        $region36: #{tpu_custom_call.1} parent=31 // pred_fallthru
          _
        // Predicated region
        $region37: #{tpu_custom_call.1} parent=31 // pred_check
          %p196 = pneg %p75
        $region38: #{tpu_custom_call.1} parent=31 // pred_check_branch
          %198 = sbr.rel (%p196) target = $region40
        $region39: #{tpu_custom_call.1} parent=31 // pred_region
          %199 = dma.done [#allocation7], 2560
        $region40: #{tpu_custom_call.1} parent=31 // pred_fallthru
          _
        %s200 = sand.u32 %s41, 1
        %s201 = scalar_lea.sflag [#allocation4], %s200
        %s202 = sand.u32 %s41, 1
        %s203 = smul.addr %s202, 8
        %s204 = scalar_lea.vmem [#allocation3], %s203
        %p205 = pneg %p54
        %p206 = pneg %p51
        %p207 = pneg %p75
        %p208 = pneg %p72
        %p209 = pneg %p96
        %p210 = pneg %p93
        %p211 = pneg %p124
        %p212 = pneg %p121
        %s213 = sand.u32 %s111, 1
        %s214 = scalar_lea.sflag [#allocation5], %s213
        %s215 = sand.u32 %s111, 1
        %s216 = smul.addr %s215, 16
        %s217 = scalar_lea.vmem [#allocation8], %s216
        %s218 = smul.u32 2, %s26
        %p220 = scmp.eq.s32.totalorder %s26, 0
        // Predicated region
        $region41: #{tpu_custom_call.1} parent=31 // pred_check
          %p221 = pneg %p220
        $region42: #{tpu_custom_call.1} parent=31 // pred_check_branch
          %223 = sbr.rel (%p221) target = $region44
        $region43: #{tpu_custom_call.1} parent=31 // pred_region
          %224 = vst [vmem:[#allocation2] sm:$0xff] 0.0
          %225 = vst [vmem:[#allocation2 + $0x8] sm:$0xff] 0.0
          %vm226 = vcmask 523264
          %227 = vst.msk [vmem:[#allocation2 + $0x10] sm:$0xff] %vm226, 0.0
          %228 = vst [vmem:[#allocation2 + $0x18] sm:$0xff] 0.0
          %229 = vst [vmem:[#allocation2 + $0x20] sm:$0xff] 0.0
          %230 = vst.msk [vmem:[#allocation2 + $0x28] sm:$0xff] %vm226, 0.0
          %v231 = vld [vmem:[%s191] sm:$0xf]
          %v232 = vld [vmem:[%s191 + $0x4] sm:$0x7]
          %v233 = vunpack.c.l.bf16 %v231
          %v234 = vunpack.c.l.bf16 %v232
          %vm237 = vcmask 1041408
          %v238 = vrot.slane %v233, 6
          %v239 = vrot.slane %v234, 6
          %v240 = vsel %vm237, %v238, %v239
          %vm243 = vcmask 523266
          %244 = vst.msk [vmem:[#allocation2] sm:$0xfc] %vm243, %v238
          %245 = vst.msk [vmem:[#allocation2 + $0x18] sm:$0xff] %vm226, %v240
          %v246 = vld [vmem:[%s191] sm:$0xf]
          %v247 = vld [vmem:[%s191 + $0x4] sm:$0xf]
          %v248 = vunpack.c.l.bf16 %v246
          %v249 = vunpack.c.l.bf16 %v247
          %vm252 = vcmask 1040384
          %v253 = vrot.slane %v248, 7
          %v254 = vrot.slane %v249, 7
          %v255 = vsel %vm252, %v253, %v254
          %256 = vrot.lane.b32.xlu0 %v253, 64
          %v257 = vpop.permute.xlu0 %256
          %258 = vrot.lane.b32.xlu0 %v255, 64
          %v259 = vpop.permute.xlu0 %258
          %vm262 = vcmask 1048065
          %263 = vst.msk [vmem:[#allocation2] sm:$0xfe] %vm262, %v257
          %vm264 = vcmask 1048064
          %265 = vst.msk [vmem:[#allocation2 + $0x18] sm:$0xff] %vm264, %v259
          %v266 = vld [vmem:[%s191] sm:$0xf]
          %v267 = vld [vmem:[%s191 + $0x4] sm:$0xf]
          %v268 = vunpack.c.l.bf16 %v266
          %v269 = vunpack.c.l.bf16 %v267
          %270 = vst.msk [vmem:[#allocation2 + $0x8] sm:$0xff] %vm226, %v268
          %271 = vst.msk [vmem:[#allocation2 + $0x20] sm:$0xff] %vm226, %v269
          %v272 = vld [vmem:[%s191] sm:$0xf]
          %v273 = vld [vmem:[%s191 + $0x4] sm:$0xf]
          %v274 = vunpack.c.l.bf16 %v272
          %v275 = vunpack.c.l.bf16 %v273
          %vm278 = vcmask 1046528
          %v279 = vrot.slane %v274, 1
          %v280 = vrot.slane %v275, 1
          %v281 = vsel %vm278, %v279, %v280
          %282 = vrot.lane.b32.xlu0 %v281, 64
          %v283 = vpop.permute.xlu0 %282
          %284 = vrot.lane.b32.xlu0 %v280, 64
          %v285 = vpop.permute.xlu0 %284
          %288 = vst.msk [vmem:[#allocation2 + $0x8] sm:$0xff] %vm264, %v283
          %vm289 = vcmask 1047040
          %290 = vst.msk [vmem:[#allocation2 + $0x20] sm:$0x7f] %vm289, %v285
          %v291 = vld [vmem:[%s191] sm:$0xe]
          %v292 = vld [vmem:[%s191 + $0x4] sm:$0xf]
          %v293 = vunpack.c.l.bf16 %v291
          %v294 = vunpack.c.l.bf16 %v292
          %vm297 = vcmask 1045504
          %v298 = vrot.slane %v293, 2
          %v299 = vrot.slane %v294, 2
          %v300 = vsel %vm297, %v298, %v299
          %303 = vst.msk [vmem:[#allocation2 + $0x10] sm:$0xff] %vm226, %v300
          %vm304 = vcmask 521216
          %305 = vst.msk [vmem:[#allocation2 + $0x28] sm:$0x3f] %vm304, %v299
        $region44: #{tpu_custom_call.1} parent=31 // pred_fallthru
          _
        %s306 = smul.u32 %s26, 16
        %s307 = sshra.s32 %s306, 3
        %s308 = sand.u32 %s306, 7
        %s309 = smul.u32 %s307, 3
        %s310 = smul.addr %s309, 8
        %s311 = scalar_lea.vmem [#allocation2], %s310
        %v312 = vld [vmem:[%s311] sm:$0xff]
        %v313 = vld [vmem:[%s311 + $0x8] sm:$0xff]
        %v314 = vld [vmem:[%s311 + $0x10] sm:$0xff]
        %v315 = vld [vmem:[%s311 + $0x18] sm:$0xff]
        %v316 = vld [vmem:[%s311 + $0x20] sm:$0xff]
        %v317 = vld [vmem:[%s311 + $0x28] sm:$0xff]
        %v318 = vpack.c.bf16 %v315, %v312
        %v319 = vpack.c.bf16 %v316, %v313
        %v320 = vpack.c.bf16 %v317, %v314
        %v321 = vld [vmem:[#allocation6] sm:$0xf]
        %v322 = vld [vmem:[#allocation6 + $0x4] sm:$0xf]
        %v323 = vld [vmem:[#allocation6 + $0x8] sm:$0xf]
        %v324 = vld [vmem:[#allocation6 + $0xc] sm:$0xf]
        %v325 = vld [vmem:[#allocation6 + $0x10] sm:$0xf]
        %v326 = vld [vmem:[#allocation6 + $0x14] sm:$0xf]
        %v327 = vld [vmem:[#allocation6 + $0x18] sm:$0xf]
        %v328 = vld [vmem:[#allocation6 + $0x1c] sm:$0xf]
        %v329 = vld [vmem:[#allocation6 + $0x20] sm:$0xf]
        %v330 = vld [vmem:[#allocation6 + $0x24] sm:$0xf]
        %v331 = vld [vmem:[#allocation6 + $0x28] sm:$0xf]
        %v332 = vld [vmem:[#allocation6 + $0x2c] sm:$0xf]
        %v333 = vld [vmem:[#allocation6 + $0x30] sm:$0xf]
        %v334 = vld [vmem:[#allocation6 + $0x34] sm:$0xf]
        %v335 = vld [vmem:[#allocation6 + $0x38] sm:$0xf]
        %v336 = vld [vmem:[#allocation6 + $0x3c] sm:$0xf]
        %v337 = vld [vmem:[#allocation6 + $0x40] sm:$0xf]
        %v338 = vld [vmem:[#allocation6 + $0x44] sm:$0xf]
        %v339 = vld [vmem:[#allocation6 + $0x48] sm:$0xf]
        %v340 = vld [vmem:[#allocation6 + $0x4c] sm:$0xf]
        %v341 = vld [vmem:[#allocation6 + $0x50] sm:$0xf]
        %v342 = vld [vmem:[#allocation6 + $0x54] sm:$0xf]
        %v343 = vld [vmem:[#allocation6 + $0x58] sm:$0xf]
        %v344 = vld [vmem:[#allocation6 + $0x5c] sm:$0xf]
        %v345 = vld [vmem:[#allocation6 + $0x60] sm:$0xf]
        %v346 = vld [vmem:[#allocation6 + $0x64] sm:$0xf]
        %v347 = vld [vmem:[#allocation6 + $0x68] sm:$0xf]
        %v348 = vld [vmem:[#allocation6 + $0x6c] sm:$0xf]
        %v349 = vld [vmem:[#allocation6 + $0x70] sm:$0xf]
        %v350 = vld [vmem:[#allocation6 + $0x74] sm:$0xf]
        %v351 = vld [vmem:[#allocation6 + $0x78] sm:$0xf]
        %v352 = vld [vmem:[#allocation6 + $0x7c] sm:$0xf]
        %v353 = vld [vmem:[#allocation6 + $0x80] sm:$0xf]
        %v354 = vld [vmem:[#allocation6 + $0x84] sm:$0xf]
        %v355 = vld [vmem:[#allocation6 + $0x88] sm:$0xf]
        %v356 = vld [vmem:[#allocation6 + $0x8c] sm:$0xf]
        %v357 = vld [vmem:[#allocation6 + $0x90] sm:$0xf]
        %v358 = vld [vmem:[#allocation6 + $0x94] sm:$0xf]
        %v359 = vld [vmem:[#allocation6 + $0x98] sm:$0xf]
        %v360 = vld [vmem:[#allocation6 + $0x9c] sm:$0xf]
        %v361 = vld [vmem:[%s2] sm:$0x1]
        %v363 = vlaneseq
        %v364 = vshrl.u32 %v363, 7
        %v365 = vsub.s32 0, %v364
        %v366 = vrot.slane %v361, %v365
        %v408 = vunpack.c.l.b16 %v321
        %v409 = vunpack.c.l.b16 %v322
        %v410 = vunpack.c.l.b16 %v323
        %v411 = vunpack.c.l.b16 %v324
        %v412 = vunpack.c.l.b16 %v325
        %v413 = vunpack.c.l.b16 %v326
        %v414 = vunpack.c.l.b16 %v327
        %v415 = vunpack.c.l.b16 %v328
        %v416 = vunpack.c.l.b16 %v329
        %v417 = vunpack.c.l.b16 %v330
        %v418 = vunpack.c.l.b16 %v331
        %v419 = vunpack.c.l.b16 %v332
        %v420 = vunpack.c.l.b16 %v333
        %v421 = vunpack.c.l.b16 %v334
        %v422 = vunpack.c.l.b16 %v335
        %v423 = vunpack.c.l.b16 %v336
        %v424 = vunpack.c.l.b16 %v337
        %v425 = vunpack.c.l.b16 %v338
        %v426 = vunpack.c.l.b16 %v339
        %v427 = vunpack.c.l.b16 %v340
        %v428 = vunpack.c.l.b16 %v341
        %v429 = vunpack.c.l.b16 %v342
        %v430 = vunpack.c.l.b16 %v343
        %v431 = vunpack.c.l.b16 %v344
        %v432 = vunpack.c.l.b16 %v345
        %v433 = vunpack.c.l.b16 %v346
        %v434 = vunpack.c.l.b16 %v347
        %v435 = vunpack.c.l.b16 %v348
        %v436 = vunpack.c.l.b16 %v349
        %v437 = vunpack.c.l.b16 %v350
        %v438 = vunpack.c.l.b16 %v351
        %v439 = vunpack.c.l.b16 %v352
        %v440 = vunpack.c.l.b16 %v353
        %v441 = vunpack.c.l.b16 %v354
        %v442 = vunpack.c.l.b16 %v355
        %v443 = vunpack.c.l.b16 %v356
        %v444 = vunpack.c.l.b16 %v357
        %v445 = vunpack.c.l.b16 %v358
        %v446 = vunpack.c.l.b16 %v359
        %v447 = vunpack.c.l.b16 %v360
        %v448 = vpack.c.b16 %v409, %v408
        %v449 = vpack.c.b16 %v411, %v410
        %v450 = vpack.c.b16 %v413, %v412
        %v451 = vpack.c.b16 %v415, %v414
        %v452 = vpack.c.b16 %v417, %v416
        %v453 = vpack.c.b16 %v419, %v418
        %v454 = vpack.c.b16 %v421, %v420
        %v455 = vpack.c.b16 %v423, %v422
        %v456 = vpack.c.b16 %v425, %v424
        %v457 = vpack.c.b16 %v427, %v426
        %v458 = vpack.c.b16 %v429, %v428
        %v459 = vpack.c.b16 %v431, %v430
        %v460 = vpack.c.b16 %v433, %v432
        %v461 = vpack.c.b16 %v435, %v434
        %v462 = vpack.c.b16 %v437, %v436
        %v463 = vpack.c.b16 %v439, %v438
        %v464 = vpack.c.b16 %v441, %v440
        %v465 = vpack.c.b16 %v443, %v442
        %v466 = vpack.c.b16 %v445, %v444
        %v467 = vpack.c.b16 %v447, %v446
        %vm488 = vcmask 523264
        %v490 = vsel %vm488, %v320, 0
        %492 = vmatprep.subr.bf16.mxu0 0
        %493 = vmatpush1.bf16.msra.mxu0 %v448
        %494 = vmatprep.subr.bf16.mxu0 0
        %495 = vmatpush1.bf16.msra.mxu0 %v449
        %496 = vmatprep.subr.bf16.mxu0 0
        %497 = vmatpush1.bf16.msra.mxu0 %v450
        %498 = vmatprep.subr.bf16.mxu0 0
        %499 = vmatpush1.bf16.msra.mxu0 %v451
        %500 = vmatprep.subr.bf16.mxu0 0
        %501 = vmatpush1.bf16.msra.mxu0 %v452
        %502 = vmatprep.subr.bf16.mxu0 0
        %503 = vmatpush1.bf16.msra.mxu0 %v453
        %504 = vmatprep.subr.bf16.mxu0 0
        %505 = vmatpush1.bf16.msra.mxu0 %v454
        %506 = vmatprep.subr.bf16.mxu0 0
        %507 = vmatpush1.bf16.msra.mxu0 %v455
        %508 = vmatprep.subr.bf16.mxu0 0
        %509 = vmatpush1.bf16.msra.mxu0 %v456
        %510 = vmatprep.subr.bf16.mxu0 0
        %511 = vmatpush1.bf16.msra.mxu0 %v457
        %512 = vmatprep.subr.bf16.mxu0 0
        %513 = vmatpush1.bf16.msra.mxu0 %v458
        %514 = vmatprep.subr.bf16.mxu0 0
        %515 = vmatpush1.bf16.msra.mxu0 %v459
        %516 = vmatprep.subr.bf16.mxu0 0
        %517 = vmatpush1.bf16.msra.mxu0 %v460
        %518 = vmatprep.subr.bf16.mxu0 0
        %519 = vmatpush1.bf16.msra.mxu0 %v461
        %520 = vmatprep.subr.bf16.mxu0 0
        %521 = vmatpush1.bf16.msra.mxu0 %v462
        %522 = vmatprep.subr.bf16.mxu0 0
        %523 = vmatpush1.bf16.msra.mxu0 %v463
        %524 = vmatprep.mubr.bf16.mxu0 %v319
        %525 = vmatmul.mubr.bf16.gmra.mrb[0].mxu0 %v318
        %v526 = vpop.f32.mrb[0].mxu0
        %v527 = vadd.f32 %v366, %v526
        %v528 = vpop.f32.mrb[0].mxu0
        %v529 = vpop.f32.mrb[0].mxu0
        %v530 = vadd.f32 %v366, %v529
        %v531 = vpop.f32.mrb[0].mxu0
        %532 = vdwg.mxu0
        %533 = vmatprep.subr.bf16.mxu0 0
        %534 = vmatpush1.bf16.msra.mxu0 %v464
        %535 = vmatprep.subr.bf16.mxu0 0
        %536 = vmatpush1.bf16.msra.mxu0 %v465
        %537 = vmatprep.subr.bf16.mxu0 0
        %538 = vmatpush1.bf16.msra.mxu0 %v466
        %539 = vmatprep.subr.bf16.mxu0 0
        %540 = vmatpush1.bf16.msra.mxu0 %v467
        %541 = vmatprep.subr.bf16.mxu0 0
        %542 = vmatpush1.bf16.msra.mxu0 0
        %543 = vmatprep.subr.bf16.mxu0 0
        %544 = vmatpush1.bf16.msra.mxu0 0
        %545 = vmatprep.subr.bf16.mxu0 0
        %546 = vmatpush1.bf16.msra.mxu0 0
        %547 = vmatprep.subr.bf16.mxu0 0
        %548 = vmatpush1.bf16.msra.mxu0 0
        %549 = vmatprep.subr.bf16.mxu0 0
        %550 = vmatpush1.bf16.msra.mxu0 0
        %551 = vmatprep.subr.bf16.mxu0 0
        %552 = vmatpush1.bf16.msra.mxu0 0
        %553 = vmatprep.subr.bf16.mxu0 0
        %554 = vmatpush1.bf16.msra.mxu0 0
        %555 = vmatprep.subr.bf16.mxu0 0
        %556 = vmatpush1.bf16.msra.mxu0 0
        %557 = vmatprep.subr.bf16.mxu0 0
        %558 = vmatpush1.bf16.msra.mxu0 0
        %559 = vmatprep.subr.bf16.mxu0 0
        %560 = vmatpush1.bf16.msra.mxu0 0
        %561 = vmatprep.subr.bf16.mxu0 0
        %562 = vmatpush1.bf16.msra.mxu0 0
        %563 = vmatprep.subr.bf16.mxu0 0
        %564 = vmatpush1.bf16.msra.mxu0 0
        %565 = vmatprep.mubr.bf16.mxu0 0
        %566 = vmatmul.mubr.bf16.gmra.mrb[0].mxu0 %v490
        %v567 = vpop.f32.mrb[0].mxu0
        %v568 = vadd.f32 %v527, %v567
        %v569 = vpop.f32.mrb[0].mxu0
        %v570 = vpop.f32.mrb[0].mxu0
        %v571 = vadd.f32 %v530, %v570
        %v572 = vpop.f32.mrb[0].mxu0
        %573 = vdwg.mxu0
        %574 = vst [vmem:[%s217] sm:$0xff] %v568
        %575 = vst [vmem:[%s217 + $0x8] sm:$0xff] %v571
        %s576 = sand.u32 %s111, 1
        %s577 = scalar_lea.sflag [#allocation5], %s576
        %s578 = sand.u32 %s111, 1
        %s579 = smul.addr %s578, 16
        %s580 = scalar_lea.vmem [#allocation8], %s579
        // Predicated region
        $region45: #{tpu_custom_call.1} parent=31 // pred_check
          %p581 = pneg %p121
        $region46: #{tpu_custom_call.1} parent=31 // pred_check_branch
          %583 = sbr.rel (%p581) target = $region48
        $region47: #{tpu_custom_call.1} parent=31 // pred_region
          %s584 = smul.u32 2, %s26
          %s586 = ssub.s32 256, 256
          %587 = vsyncadd %s577, %s586
          %s588 = smul.addr %s25, 2
          %s589 = sadd.s32 %s584, %s588
          %s590 = smul.addr %s589, 128
          %s591 = scalar_lea.hbm %s3, %s590
          %s592 = sshll.u32 %s580, 4
          %s593 = int_to_ptr.vmem [resolvable:$true] %s592
          %598 = dma.vmem_to_hbm [thread:$0]  %s593, 256, %s591, %s577, 128, 128, 8
        $region48: #{tpu_custom_call.1} parent=31 // pred_fallthru
          _
      $region32: #{tpu_custom_call.1} parent=5 // pred_fallthru
        _
      %p599 = scmp.le.s32.totalorder 2, %s16
      // Predicated region
      $region49: #{tpu_custom_call.1} parent=5 // pred_check
        %p600 = pneg %p599
      $region50: #{tpu_custom_call.1} parent=5 // pred_check_branch
        %602 = sbr.rel (%p600) target = $region52
      $region51: #{tpu_custom_call.1} parent=5 // pred_region
        %s603 = ssub.s32 %s16, 2
        // Predicated region
        $region53: #{tpu_custom_call.1} parent=51 // pred_check
          %p604 = pneg %p127
        $region54: #{tpu_custom_call.1} parent=51 // pred_check_branch
          %606 = sbr.rel (%p604) target = $region56
        $region55: #{tpu_custom_call.1} parent=51 // pred_region
          %s607 = sand.u32 %s112, 1
          %s608 = scalar_lea.sflag [#allocation5], %s607
          %s609 = sand.u32 %s112, 1
          %s610 = smul.addr %s609, 16
          %s611 = scalar_lea.vmem [#allocation8], %s610
          %612 = dma.done %s608, 256
        $region56: #{tpu_custom_call.1} parent=51 // pred_fallthru
          _
      $region52: #{tpu_custom_call.1} parent=5 // pred_fallthru
        _
    $region6: #{tpu_custom_call.1} parent=1 // loop_footer
      %s20 = sadd.s32 1, %s16
    $region7: #{tpu_custom_call.1} parent=1 // loop_footer_branch
      %15 = sbr.rel target = $region3
    $region8: #{tpu_custom_call.1} parent=1 // loop_exit
      _
    %613 = vsyncpa [#allocation4], 1
    %s614 = scalar_lea.sflag [#allocation4], 1
    %615 = vsyncpa %s614, 1
    %616 = vsyncpa [#allocation7], 1
    %617 = vsyncpa [#allocation5], 1
    %s618 = scalar_lea.sflag [#allocation5], 1
    %619 = vsyncpa %s618, 1

</llo_original>
